<compile_context>
chip_gen: v7x
topology: tpu7x:2x2x1
jax: 0.10.0
libtpu: 0.0.40
codegen_flags: <defaults>
</compile_context>

<pallas_src>
import functools

import jax
import jax.numpy as jnp
import numpy as np
from jax.experimental import pallas as pl
from jax.experimental.pallas import tpu as pltpu

LANE = 128            # TPU lane width; each GRU gate gets its own 128-lane block
NGATES = 3            # r, z, n
W3 = NGATES * LANE    # fused gate width (384)
BP = 8                # batch padded to one sublane tile


def _pad8(n):
    return ((n + 7) // 8) * 8


def gru_fc_kernel(x_ref, p_ref, y_ref, *, T, layout):
    """Whole GRU sequence + fused FC head, one kernel invocation, 2 input DMAs.

    Shapes seen inside the kernel:
      x_ref : (T*BP, Vp)  time-major input, batch padded to BP=8, feats to Vp
      p_ref : (R, 384)    packed parameter slab (see prepare_params)
      y_ref : (BP, 384)   padded output; lanes [0,V) of rows [0,B) are valid
    """
    r_wi, n_wi, r_wh, r_bi, r_bhn, r_bfc, r_wfc = layout

    x = x_ref[...]                                     # (T*BP, Vp)

    # Static, 8-aligned views into the single parameter slab.
    w_i  = p_ref[r_wi:r_wi + n_wi, :]                  # (Vp, 384)  input->gates
    w_h  = p_ref[r_wh:r_wh + LANE, :]                  # (128,384)  hidden->gates
    b_i  = p_ref[r_bi:r_bi + BP, :]                    # (8, 384)   row-replicated
    b_hn = p_ref[r_bhn:r_bhn + BP, :]                  # (8, 384)   row-replicated
    b_fc = p_ref[r_bfc:r_bfc + BP, :]                  # (8, 384)   row-replicated
    w_fc = p_ref[r_wfc:r_wfc + LANE, :]                # (128,384)  fc head

    # Hoisted input-side gate pre-activations for ALL timesteps: ONE fused
    # (T*BP, Vp) x (Vp, 3*128) MXU matmul. b_hr / b_hz are already folded
    # into b_i, so this is the only bias add on the input side.
    gi = jnp.dot(x, w_i, preferred_element_type=jnp.float32)   # (T*BP, 384)
    gi = gi.reshape(T, BP, W3) + b_i                           # bias bcast over T

    # Recurrence: one fused (8,128)x(128,384) matmul per step. All slices are
    # leading-dim or 128-lane-tile aligned; h carries 128 lanes with lanes>=H
    # staying exactly 0 (zero weight columns / zero bias in the padding lanes).
    h = jnp.zeros((BP, LANE), jnp.float32)
    for t in range(T):
        gi_t = gi[t]                                                  # (8, 384)
        gh = jnp.dot(h, w_h, preferred_element_type=jnp.float32) + b_hn
        r = jax.nn.sigmoid(gi_t[:, 0:LANE]           + gh[:, 0:LANE])
        z = jax.nn.sigmoid(gi_t[:, LANE:2 * LANE]    + gh[:, LANE:2 * LANE])
        n = jnp.tanh(gi_t[:, 2 * LANE:3 * LANE] + r * gh[:, 2 * LANE:3 * LANE])
        h = (1.0 - z) * n + z * h

    # Fused Linear head on the final hidden state.
    y = jnp.dot(h, w_fc, preferred_element_type=jnp.float32) + b_fc
    y_ref[...] = y.astype(y_ref.dtype)


def prepare_params(w_ih, w_hh, b_ih, b_hh, w_fc, b_fc):
    """One-time packing of all GRU + FC parameters into a single padded slab.

    PyTorch layouts: w_ih (3H, V), w_hh (3H, H), b_* (3H,), gate order [r|z|n];
    w_fc (V, H), b_fc (V,).

    Slab layout (f32, 384 lanes wide, all row offsets multiples of 8):
      rows [r_wi,  r_wi+Vp)  : W_i  per gate, transposed, gate g at lanes g*128
      rows [r_wh,  r_wh+128) : W_h  per gate, transposed (rows >= H are zero)
      rows [r_bi,  r_bi+8)   : b_ir+b_hr | b_iz+b_hz | b_in   (row-replicated)
      rows [r_bhn, r_bhn+8)  : b_hn in gate-n block only      (row-replicated)
      rows [r_bfc, r_bfc+8)  : b_fc in lanes [0,V)            (row-replicated)
      rows [r_wfc, r_wfc+128): W_fc transposed, lanes [0,V)   (rows >= H zero)
    """
    w_ih = np.asarray(w_ih, np.float32)
    w_hh = np.asarray(w_hh, np.float32)
    b_ih = np.asarray(b_ih, np.float32)
    b_hh = np.asarray(b_hh, np.float32)
    w_fc = np.asarray(w_fc, np.float32)
    b_fc = np.asarray(b_fc, np.float32)

    H = w_hh.shape[1]
    V = w_ih.shape[1]
    assert H <= LANE and V <= LANE
    Vp = _pad8(V)

    r_wi = 0
    r_wh = r_wi + Vp
    r_bi = r_wh + LANE
    r_bhn = r_bi + BP
    r_bfc = r_bhn + BP
    r_wfc = r_bfc + BP
    rows = r_wfc + LANE

    slab = np.zeros((rows, W3), np.float32)
    for g in range(NGATES):
        col = g * LANE
        slab[r_wi:r_wi + V, col:col + H] = w_ih[g * H:(g + 1) * H, :].T
        slab[r_wh:r_wh + H, col:col + H] = w_hh[g * H:(g + 1) * H, :].T

    # Fold b_hr into b_ir and b_hz into b_iz (exact GRU semantics); keep b_hn
    # separate since it lives inside the r * (W_hn h + b_hn) term.
    slab[r_bi:r_bi + BP, 0 * LANE:0 * LANE + H] = b_ih[0:H] + b_hh[0:H]
    slab[r_bi:r_bi + BP, 1 * LANE:1 * LANE + H] = b_ih[H:2 * H] + b_hh[H:2 * H]
    slab[r_bi:r_bi + BP, 2 * LANE:2 * LANE + H] = b_ih[2 * H:3 * H]
    slab[r_bhn:r_bhn + BP, 2 * LANE:2 * LANE + H] = b_hh[2 * H:3 * H]
    slab[r_bfc:r_bfc + BP, 0:V] = b_fc
    slab[r_wfc:r_wfc + H, 0:V] = w_fc.T

    layout = (r_wi, Vp, r_wh, r_bi, r_bhn, r_bfc, r_wfc)
    dims = (H, V, Vp)
    return jnp.asarray(slab), layout, dims


@functools.partial(jax.jit, static_argnames=("layout", "dims"))
def gru_fc_forward(x_btv, slab, layout, dims):
    """x_btv: (B, T, V) batch_first input. Returns y: (B, V)."""
    H, V, Vp = dims
    B, T, _ = x_btv.shape
    assert B <= BP, "this small-batch kernel pads batch to a single 8-row tile"

    # Pad batch -> BP and features -> Vp, flatten time-major so every per-step
    # gate slice in the kernel is a full aligned (BP, 384) slab.
    x_pad = jnp.zeros((BP, T, Vp), jnp.float32)
    x_pad = x_pad.at[:B, :, :V].set(x_btv.astype(jnp.float32))
    x_flat = jnp.transpose(x_pad, (1, 0, 2)).reshape(T * BP, Vp)

    vmem = pl.BlockSpec(memory_space=pltpu.MemorySpace.VMEM)
    y_pad = pl.pallas_call(
        functools.partial(gru_fc_kernel, T=T, layout=layout),
        out_shape=jax.ShapeDtypeStruct((BP, W3), jnp.float32),
        in_specs=[vmem, vmem],
        out_specs=vmem,
    )(x_flat, slab)
    return y_pad[:B, :V].astype(x_btv.dtype)


def gru_fc_reference(x_btv, w_ih, w_hh, b_ih, b_hh, w_fc, b_fc):
    """Pure-JAX reference matching torch.nn.GRU(batch_first=True) + Linear."""
    B, T, V = x_btv.shape
    H = w_hh.shape[1]
    h = jnp.zeros((B, H), jnp.float32)
    for t in range(T):
        x_t = x_btv[:, t, :]
        gi = x_t @ w_ih.T + b_ih
        gh = h @ w_hh.T + b_hh
        i_r, i_z, i_n = gi[:, :H], gi[:, H:2 * H], gi[:, 2 * H:]
        h_r, h_z, h_n = gh[:, :H], gh[:, H:2 * H], gh[:, 2 * H:]
        r = jax.nn.sigmoid(i_r + h_r)
        z = jax.nn.sigmoid(i_z + h_z)
        n = jnp.tanh(i_n + r * h_n)
        h = (1.0 - z) * n + z * h
    return h @ w_fc.T + b_fc


if __name__ == "__main__":
    # Small shapes consistent with the module: batch=2, seq(wnd_dim)=8,
    # var_dim=4, RNN_hid_dim=32.
    B, T, V, H = 2, 8, 4, 32

    key = jax.random.PRNGKey(0)
    ks = jax.random.split(key, 7)

    # Deterministic init mimicking PyTorch's U(-1/sqrt(H), 1/sqrt(H)).
    bound = 1.0 / float(np.sqrt(H))
    w_ih = jax.random.uniform(ks[0], (3 * H, V), jnp.float32, -bound, bound)
    w_hh = jax.random.uniform(ks[1], (3 * H, H), jnp.float32, -bound, bound)
    b_ih = jax.random.uniform(ks[2], (3 * H,), jnp.float32, -bound, bound)
    b_hh = jax.random.uniform(ks[3], (3 * H,), jnp.float32, -bound, bound)
    w_fc = jax.random.uniform(ks[4], (V, H), jnp.float32, -bound, bound)
    b_fc = jax.random.uniform(ks[5], (V,), jnp.float32, -bound, bound)

    x = jax.random.normal(ks[6], (B, T, V), jnp.float32)

    slab, layout, dims = prepare_params(w_ih, w_hh, b_ih, b_hh, w_fc, b_fc)

    y = gru_fc_forward(x, slab, layout, dims)
    y = jax.block_until_ready(y)

    y_ref = gru_fc_reference(x, w_ih, w_hh, b_ih, b_hh, w_fc, b_fc)
    np.testing.assert_allclose(np.asarray(y), np.asarray(y_ref),
                               rtol=1e-5, atol=1e-5)

    print("KERNEL_OK")
</pallas_src>

<mosaic_0001>
module attributes {stable_mosaic.version = 11 : i64} {
  func.func @gru_fc_kernel(%arg0: memref<64x8xf32, #tpu.memory_space<vmem>>, %arg1: memref<288x384xf32, #tpu.memory_space<vmem>>, %arg2: memref<8x384xf32, #tpu.memory_space<vmem>>) attributes {dimension_semantics = [], scalar_prefetch = 0 : i64, scratch_operands = 0 : i64, tpu.core_type = #tpu.core_type<tc>} {
    %c0 = arith.constant 0 : index
    %c0_0 = arith.constant 0 : index
    %0 = vector.load %arg0[%c0, %c0_0] : memref<64x8xf32, #tpu.memory_space<vmem>>, vector<64x8xf32>
    %c0_1 = arith.constant 0 : index
    %c0_2 = arith.constant 0 : index
    %1 = vector.load %arg1[%c0_1, %c0_2] : memref<288x384xf32, #tpu.memory_space<vmem>>, vector<8x384xf32>
    %c8 = arith.constant 8 : index
    %c0_3 = arith.constant 0 : index
    %2 = vector.load %arg1[%c8, %c0_3] : memref<288x384xf32, #tpu.memory_space<vmem>>, vector<128x384xf32>
    %c136 = arith.constant 136 : index
    %c0_4 = arith.constant 0 : index
    %3 = vector.load %arg1[%c136, %c0_4] : memref<288x384xf32, #tpu.memory_space<vmem>>, vector<8x384xf32>
    %c144 = arith.constant 144 : index
    %c0_5 = arith.constant 0 : index
    %4 = vector.load %arg1[%c144, %c0_5] : memref<288x384xf32, #tpu.memory_space<vmem>>, vector<8x384xf32>
    %c152 = arith.constant 152 : index
    %c0_6 = arith.constant 0 : index
    %5 = vector.load %arg1[%c152, %c0_6] : memref<288x384xf32, #tpu.memory_space<vmem>>, vector<8x384xf32>
    %c160 = arith.constant 160 : index
    %c0_7 = arith.constant 0 : index
    %6 = vector.load %arg1[%c160, %c0_7] : memref<288x384xf32, #tpu.memory_space<vmem>>, vector<128x384xf32>
    %cst = arith.constant dense<0.000000e+00> : vector<64x384xf32>
    %7 = tpu.matmul %0, %1, %cst {dimension_numbers = #tpu.dot_dimension_numbers<[1], [0], [0], [1], [0, 0, 1, 1], [], []>} : vector<64x8xf32>, vector<8x384xf32>, vector<64x384xf32> -> vector<64x384xf32>
    %8 = vector.shape_cast %7 : vector<64x384xf32> to vector<8x8x384xf32>
    %9 = vector.shape_cast %3 : vector<8x384xf32> to vector<1x8x384xf32>
    %10 = vector.broadcast %9 : vector<1x8x384xf32> to vector<8x8x384xf32>
    %11 = arith.addf %8, %10 : vector<8x8x384xf32>
    %cst_8 = arith.constant 0.000000e+00 : f32
    %12 = vector.broadcast %cst_8 : f32 to vector<8x128xf32>
    %13 = vector.extract_strided_slice %11 {offsets = [0, 0, 0], sizes = [1, 8, 384], strides = [1, 1, 1]} : vector<8x8x384xf32> to vector<1x8x384xf32>
    %14 = vector.shape_cast %13 : vector<1x8x384xf32> to vector<8x384xf32>
    %cst_9 = arith.constant dense<0.000000e+00> : vector<8x384xf32>
    %15 = tpu.matmul %12, %2, %cst_9 {dimension_numbers = #tpu.dot_dimension_numbers<[1], [0], [0], [1], [0, 0, 1, 1], [], []>} : vector<8x128xf32>, vector<128x384xf32>, vector<8x384xf32> -> vector<8x384xf32>
    %16 = arith.addf %15, %4 : vector<8x384xf32>
    %17 = vector.extract_strided_slice %14 {offsets = [0, 0], sizes = [8, 128], strides = [1, 1]} : vector<8x384xf32> to vector<8x128xf32>
    %18 = vector.extract_strided_slice %16 {offsets = [0, 0], sizes = [8, 128], strides = [1, 1]} : vector<8x384xf32> to vector<8x128xf32>
    %19 = arith.addf %17, %18 : vector<8x128xf32>
    %20 = arith.negf %19 : vector<8x128xf32>
    %21 = math.exp %20 : vector<8x128xf32>
    %cst_10 = arith.constant 1.000000e+00 : f32
    %22 = vector.broadcast %cst_10 : f32 to vector<8x128xf32>
    %23 = arith.addf %22, %21 : vector<8x128xf32>
    %24 = arith.divf %22, %23 : vector<8x128xf32>
    %25 = vector.extract_strided_slice %14 {offsets = [0, 128], sizes = [8, 128], strides = [1, 1]} : vector<8x384xf32> to vector<8x128xf32>
    %26 = vector.extract_strided_slice %16 {offsets = [0, 128], sizes = [8, 128], strides = [1, 1]} : vector<8x384xf32> to vector<8x128xf32>
    %27 = arith.addf %25, %26 : vector<8x128xf32>
    %28 = arith.negf %27 : vector<8x128xf32>
    %29 = math.exp %28 : vector<8x128xf32>
    %cst_11 = arith.constant 1.000000e+00 : f32
    %30 = vector.broadcast %cst_11 : f32 to vector<8x128xf32>
    %31 = arith.addf %30, %29 : vector<8x128xf32>
    %32 = arith.divf %30, %31 : vector<8x128xf32>
    %33 = vector.extract_strided_slice %14 {offsets = [0, 256], sizes = [8, 128], strides = [1, 1]} : vector<8x384xf32> to vector<8x128xf32>
    %34 = vector.extract_strided_slice %16 {offsets = [0, 256], sizes = [8, 128], strides = [1, 1]} : vector<8x384xf32> to vector<8x128xf32>
    %35 = arith.mulf %24, %34 : vector<8x128xf32>
    %36 = arith.addf %33, %35 : vector<8x128xf32>
    %37 = math.tanh %36 : vector<8x128xf32>
    %cst_12 = arith.constant 1.000000e+00 : f32
    %38 = vector.broadcast %cst_12 : f32 to vector<8x128xf32>
    %39 = arith.subf %38, %32 : vector<8x128xf32>
    %40 = arith.mulf %39, %37 : vector<8x128xf32>
    %41 = arith.mulf %32, %12 : vector<8x128xf32>
    %42 = arith.addf %40, %41 : vector<8x128xf32>
    %43 = vector.extract_strided_slice %11 {offsets = [1, 0, 0], sizes = [1, 8, 384], strides = [1, 1, 1]} : vector<8x8x384xf32> to vector<1x8x384xf32>
    %44 = vector.shape_cast %43 : vector<1x8x384xf32> to vector<8x384xf32>
    %cst_13 = arith.constant dense<0.000000e+00> : vector<8x384xf32>
    %45 = tpu.matmul %42, %2, %cst_13 {dimension_numbers = #tpu.dot_dimension_numbers<[1], [0], [0], [1], [0, 0, 1, 1], [], []>} : vector<8x128xf32>, vector<128x384xf32>, vector<8x384xf32> -> vector<8x384xf32>
    %46 = arith.addf %45, %4 : vector<8x384xf32>
    %47 = vector.extract_strided_slice %44 {offsets = [0, 0], sizes = [8, 128], strides = [1, 1]} : vector<8x384xf32> to vector<8x128xf32>
    %48 = vector.extract_strided_slice %46 {offsets = [0, 0], sizes = [8, 128], strides = [1, 1]} : vector<8x384xf32> to vector<8x128xf32>
    %49 = arith.addf %47, %48 : vector<8x128xf32>
    %50 = arith.negf %49 : vector<8x128xf32>
    %51 = math.exp %50 : vector<8x128xf32>
    %cst_14 = arith.constant 1.000000e+00 : f32
    %52 = vector.broadcast %cst_14 : f32 to vector<8x128xf32>
    %53 = arith.addf %52, %51 : vector<8x128xf32>
    %54 = arith.divf %52, %53 : vector<8x128xf32>
    %55 = vector.extract_strided_slice %44 {offsets = [0, 128], sizes = [8, 128], strides = [1, 1]} : vector<8x384xf32> to vector<8x128xf32>
    %56 = vector.extract_strided_slice %46 {offsets = [0, 128], sizes = [8, 128], strides = [1, 1]} : vector<8x384xf32> to vector<8x128xf32>
    %57 = arith.addf %55, %56 : vector<8x128xf32>
    %58 = arith.negf %57 : vector<8x128xf32>
    %59 = math.exp %58 : vector<8x128xf32>
    %cst_15 = arith.constant 1.000000e+00 : f32
    %60 = vector.broadcast %cst_15 : f32 to vector<8x128xf32>
    %61 = arith.addf %60, %59 : vector<8x128xf32>
    %62 = arith.divf %60, %61 : vector<8x128xf32>
    %63 = vector.extract_strided_slice %44 {offsets = [0, 256], sizes = [8, 128], strides = [1, 1]} : vector<8x384xf32> to vector<8x128xf32>
    %64 = vector.extract_strided_slice %46 {offsets = [0, 256], sizes = [8, 128], strides = [1, 1]} : vector<8x384xf32> to vector<8x128xf32>
    %65 = arith.mulf %54, %64 : vector<8x128xf32>
    %66 = arith.addf %63, %65 : vector<8x128xf32>
    %67 = math.tanh %66 : vector<8x128xf32>
    %cst_16 = arith.constant 1.000000e+00 : f32
    %68 = vector.broadcast %cst_16 : f32 to vector<8x128xf32>
    %69 = arith.subf %68, %62 : vector<8x128xf32>
    %70 = arith.mulf %69, %67 : vector<8x128xf32>
    %71 = arith.mulf %62, %42 : vector<8x128xf32>
    %72 = arith.addf %70, %71 : vector<8x128xf32>
    %73 = vector.extract_strided_slice %11 {offsets = [2, 0, 0], sizes = [1, 8, 384], strides = [1, 1, 1]} : vector<8x8x384xf32> to vector<1x8x384xf32>
    %74 = vector.shape_cast %73 : vector<1x8x384xf32> to vector<8x384xf32>
    %cst_17 = arith.constant dense<0.000000e+00> : vector<8x384xf32>
    %75 = tpu.matmul %72, %2, %cst_17 {dimension_numbers = #tpu.dot_dimension_numbers<[1], [0], [0], [1], [0, 0, 1, 1], [], []>} : vector<8x128xf32>, vector<128x384xf32>, vector<8x384xf32> -> vector<8x384xf32>
    %76 = arith.addf %75, %4 : vector<8x384xf32>
    %77 = vector.extract_strided_slice %74 {offsets = [0, 0], sizes = [8, 128], strides = [1, 1]} : vector<8x384xf32> to vector<8x128xf32>
    %78 = vector.extract_strided_slice %76 {offsets = [0, 0], sizes = [8, 128], strides = [1, 1]} : vector<8x384xf32> to vector<8x128xf32>
    %79 = arith.addf %77, %78 : vector<8x128xf32>
    %80 = arith.negf %79 : vector<8x128xf32>
    %81 = math.exp %80 : vector<8x128xf32>
    %cst_18 = arith.constant 1.000000e+00 : f32
    %82 = vector.broadcast %cst_18 : f32 to vector<8x128xf32>
    %83 = arith.addf %82, %81 : vector<8x128xf32>
    %84 = arith.divf %82, %83 : vector<8x128xf32>
    %85 = vector.extract_strided_slice %74 {offsets = [0, 128], sizes = [8, 128], strides = [1, 1]} : vector<8x384xf32> to vector<8x128xf32>
    %86 = vector.extract_strided_slice %76 {offsets = [0, 128], sizes = [8, 128], strides = [1, 1]} : vector<8x384xf32> to vector<8x128xf32>
    %87 = arith.addf %85, %86 : vector<8x128xf32>
    %88 = arith.negf %87 : vector<8x128xf32>
    %89 = math.exp %88 : vector<8x128xf32>
    %cst_19 = arith.constant 1.000000e+00 : f32
    %90 = vector.broadcast %cst_19 : f32 to vector<8x128xf32>
    %91 = arith.addf %90, %89 : vector<8x128xf32>
    %92 = arith.divf %90, %91 : vector<8x128xf32>
    %93 = vector.extract_strided_slice %74 {offsets = [0, 256], sizes = [8, 128], strides = [1, 1]} : vector<8x384xf32> to vector<8x128xf32>
    %94 = vector.extract_strided_slice %76 {offsets = [0, 256], sizes = [8, 128], strides = [1, 1]} : vector<8x384xf32> to vector<8x128xf32>
    %95 = arith.mulf %84, %94 : vector<8x128xf32>
    %96 = arith.addf %93, %95 : vector<8x128xf32>
    %97 = math.tanh %96 : vector<8x128xf32>
    %cst_20 = arith.constant 1.000000e+00 : f32
    %98 = vector.broadcast %cst_20 : f32 to vector<8x128xf32>
    %99 = arith.subf %98, %92 : vector<8x128xf32>
    %100 = arith.mulf %99, %97 : vector<8x128xf32>
    %101 = arith.mulf %92, %72 : vector<8x128xf32>
    %102 = arith.addf %100, %101 : vector<8x128xf32>
    %103 = vector.extract_strided_slice %11 {offsets = [3, 0, 0], sizes = [1, 8, 384], strides = [1, 1, 1]} : vector<8x8x384xf32> to vector<1x8x384xf32>
    %104 = vector.shape_cast %103 : vector<1x8x384xf32> to vector<8x384xf32>
    %cst_21 = arith.constant dense<0.000000e+00> : vector<8x384xf32>
    %105 = tpu.matmul %102, %2, %cst_21 {dimension_numbers = #tpu.dot_dimension_numbers<[1], [0], [0], [1], [0, 0, 1, 1], [], []>} : vector<8x128xf32>, vector<128x384xf32>, vector<8x384xf32> -> vector<8x384xf32>
    %106 = arith.addf %105, %4 : vector<8x384xf32>
    %107 = vector.extract_strided_slice %104 {offsets = [0, 0], sizes = [8, 128], strides = [1, 1]} : vector<8x384xf32> to vector<8x128xf32>
    %108 = vector.extract_strided_slice %106 {offsets = [0, 0], sizes = [8, 128], strides = [1, 1]} : vector<8x384xf32> to vector<8x128xf32>
    %109 = arith.addf %107, %108 : vector<8x128xf32>
    %110 = arith.negf %109 : vector<8x128xf32>
    %111 = math.exp %110 : vector<8x128xf32>
    %cst_22 = arith.constant 1.000000e+00 : f32
    %112 = vector.broadcast %cst_22 : f32 to vector<8x128xf32>
    %113 = arith.addf %112, %111 : vector<8x128xf32>
    %114 = arith.divf %112, %113 : vector<8x128xf32>
    %115 = vector.extract_strided_slice %104 {offsets = [0, 128], sizes = [8, 128], strides = [1, 1]} : vector<8x384xf32> to vector<8x128xf32>
    %116 = vector.extract_strided_slice %106 {offsets = [0, 128], sizes = [8, 128], strides = [1, 1]} : vector<8x384xf32> to vector<8x128xf32>
    %117 = arith.addf %115, %116 : vector<8x128xf32>
    %118 = arith.negf %117 : vector<8x128xf32>
    %119 = math.exp %118 : vector<8x128xf32>
    %cst_23 = arith.constant 1.000000e+00 : f32
    %120 = vector.broadcast %cst_23 : f32 to vector<8x128xf32>
    %121 = arith.addf %120, %119 : vector<8x128xf32>
    %122 = arith.divf %120, %121 : vector<8x128xf32>
    %123 = vector.extract_strided_slice %104 {offsets = [0, 256], sizes = [8, 128], strides = [1, 1]} : vector<8x384xf32> to vector<8x128xf32>
    %124 = vector.extract_strided_slice %106 {offsets = [0, 256], sizes = [8, 128], strides = [1, 1]} : vector<8x384xf32> to vector<8x128xf32>
    %125 = arith.mulf %114, %124 : vector<8x128xf32>
    %126 = arith.addf %123, %125 : vector<8x128xf32>
    %127 = math.tanh %126 : vector<8x128xf32>
    %cst_24 = arith.constant 1.000000e+00 : f32
    %128 = vector.broadcast %cst_24 : f32 to vector<8x128xf32>
    %129 = arith.subf %128, %122 : vector<8x128xf32>
    %130 = arith.mulf %129, %127 : vector<8x128xf32>
    %131 = arith.mulf %122, %102 : vector<8x128xf32>
    %132 = arith.addf %130, %131 : vector<8x128xf32>
    %133 = vector.extract_strided_slice %11 {offsets = [4, 0, 0], sizes = [1, 8, 384], strides = [1, 1, 1]} : vector<8x8x384xf32> to vector<1x8x384xf32>
    %134 = vector.shape_cast %133 : vector<1x8x384xf32> to vector<8x384xf32>
    %cst_25 = arith.constant dense<0.000000e+00> : vector<8x384xf32>
    %135 = tpu.matmul %132, %2, %cst_25 {dimension_numbers = #tpu.dot_dimension_numbers<[1], [0], [0], [1], [0, 0, 1, 1], [], []>} : vector<8x128xf32>, vector<128x384xf32>, vector<8x384xf32> -> vector<8x384xf32>
    %136 = arith.addf %135, %4 : vector<8x384xf32>
    %137 = vector.extract_strided_slice %134 {offsets = [0, 0], sizes = [8, 128], strides = [1, 1]} : vector<8x384xf32> to vector<8x128xf32>
    %138 = vector.extract_strided_slice %136 {offsets = [0, 0], sizes = [8, 128], strides = [1, 1]} : vector<8x384xf32> to vector<8x128xf32>
    %139 = arith.addf %137, %138 : vector<8x128xf32>
    %140 = arith.negf %139 : vector<8x128xf32>
    %141 = math.exp %140 : vector<8x128xf32>
    %cst_26 = arith.constant 1.000000e+00 : f32
    %142 = vector.broadcast %cst_26 : f32 to vector<8x128xf32>
    %143 = arith.addf %142, %141 : vector<8x128xf32>
    %144 = arith.divf %142, %143 : vector<8x128xf32>
    %145 = vector.extract_strided_slice %134 {offsets = [0, 128], sizes = [8, 128], strides = [1, 1]} : vector<8x384xf32> to vector<8x128xf32>
    %146 = vector.extract_strided_slice %136 {offsets = [0, 128], sizes = [8, 128], strides = [1, 1]} : vector<8x384xf32> to vector<8x128xf32>
    %147 = arith.addf %145, %146 : vector<8x128xf32>
    %148 = arith.negf %147 : vector<8x128xf32>
    %149 = math.exp %148 : vector<8x128xf32>
    %cst_27 = arith.constant 1.000000e+00 : f32
    %150 = vector.broadcast %cst_27 : f32 to vector<8x128xf32>
    %151 = arith.addf %150, %149 : vector<8x128xf32>
    %152 = arith.divf %150, %151 : vector<8x128xf32>
    %153 = vector.extract_strided_slice %134 {offsets = [0, 256], sizes = [8, 128], strides = [1, 1]} : vector<8x384xf32> to vector<8x128xf32>
    %154 = vector.extract_strided_slice %136 {offsets = [0, 256], sizes = [8, 128], strides = [1, 1]} : vector<8x384xf32> to vector<8x128xf32>
    %155 = arith.mulf %144, %154 : vector<8x128xf32>
    %156 = arith.addf %153, %155 : vector<8x128xf32>
    %157 = math.tanh %156 : vector<8x128xf32>
    %cst_28 = arith.constant 1.000000e+00 : f32
    %158 = vector.broadcast %cst_28 : f32 to vector<8x128xf32>
    %159 = arith.subf %158, %152 : vector<8x128xf32>
    %160 = arith.mulf %159, %157 : vector<8x128xf32>
    %161 = arith.mulf %152, %132 : vector<8x128xf32>
    %162 = arith.addf %160, %161 : vector<8x128xf32>
    %163 = vector.extract_strided_slice %11 {offsets = [5, 0, 0], sizes = [1, 8, 384], strides = [1, 1, 1]} : vector<8x8x384xf32> to vector<1x8x384xf32>
    %164 = vector.shape_cast %163 : vector<1x8x384xf32> to vector<8x384xf32>
    %cst_29 = arith.constant dense<0.000000e+00> : vector<8x384xf32>
    %165 = tpu.matmul %162, %2, %cst_29 {dimension_numbers = #tpu.dot_dimension_numbers<[1], [0], [0], [1], [0, 0, 1, 1], [], []>} : vector<8x128xf32>, vector<128x384xf32>, vector<8x384xf32> -> vector<8x384xf32>
    %166 = arith.addf %165, %4 : vector<8x384xf32>
    %167 = vector.extract_strided_slice %164 {offsets = [0, 0], sizes = [8, 128], strides = [1, 1]} : vector<8x384xf32> to vector<8x128xf32>
    %168 = vector.extract_strided_slice %166 {offsets = [0, 0], sizes = [8, 128], strides = [1, 1]} : vector<8x384xf32> to vector<8x128xf32>
    %169 = arith.addf %167, %168 : vector<8x128xf32>
    %170 = arith.negf %169 : vector<8x128xf32>
    %171 = math.exp %170 : vector<8x128xf32>
    %cst_30 = arith.constant 1.000000e+00 : f32
    %172 = vector.broadcast %cst_30 : f32 to vector<8x128xf32>
    %173 = arith.addf %172, %171 : vector<8x128xf32>
    %174 = arith.divf %172, %173 : vector<8x128xf32>
    %175 = vector.extract_strided_slice %164 {offsets = [0, 128], sizes = [8, 128], strides = [1, 1]} : vector<8x384xf32> to vector<8x128xf32>
    %176 = vector.extract_strided_slice %166 {offsets = [0, 128], sizes = [8, 128], strides = [1, 1]} : vector<8x384xf32> to vector<8x128xf32>
    %177 = arith.addf %175, %176 : vector<8x128xf32>
    %178 = arith.negf %177 : vector<8x128xf32>
    %179 = math.exp %178 : vector<8x128xf32>
    %cst_31 = arith.constant 1.000000e+00 : f32
    %180 = vector.broadcast %cst_31 : f32 to vector<8x128xf32>
    %181 = arith.addf %180, %179 : vector<8x128xf32>
    %182 = arith.divf %180, %181 : vector<8x128xf32>
    %183 = vector.extract_strided_slice %164 {offsets = [0, 256], sizes = [8, 128], strides = [1, 1]} : vector<8x384xf32> to vector<8x128xf32>
    %184 = vector.extract_strided_slice %166 {offsets = [0, 256], sizes = [8, 128], strides = [1, 1]} : vector<8x384xf32> to vector<8x128xf32>
    %185 = arith.mulf %174, %184 : vector<8x128xf32>
    %186 = arith.addf %183, %185 : vector<8x128xf32>
    %187 = math.tanh %186 : vector<8x128xf32>
    %cst_32 = arith.constant 1.000000e+00 : f32
    %188 = vector.broadcast %cst_32 : f32 to vector<8x128xf32>
    %189 = arith.subf %188, %182 : vector<8x128xf32>
    %190 = arith.mulf %189, %187 : vector<8x128xf32>
    %191 = arith.mulf %182, %162 : vector<8x128xf32>
    %192 = arith.addf %190, %191 : vector<8x128xf32>
    %193 = vector.extract_strided_slice %11 {offsets = [6, 0, 0], sizes = [1, 8, 384], strides = [1, 1, 1]} : vector<8x8x384xf32> to vector<1x8x384xf32>
    %194 = vector.shape_cast %193 : vector<1x8x384xf32> to vector<8x384xf32>
    %cst_33 = arith.constant dense<0.000000e+00> : vector<8x384xf32>
    %195 = tpu.matmul %192, %2, %cst_33 {dimension_numbers = #tpu.dot_dimension_numbers<[1], [0], [0], [1], [0, 0, 1, 1], [], []>} : vector<8x128xf32>, vector<128x384xf32>, vector<8x384xf32> -> vector<8x384xf32>
    %196 = arith.addf %195, %4 : vector<8x384xf32>
    %197 = vector.extract_strided_slice %194 {offsets = [0, 0], sizes = [8, 128], strides = [1, 1]} : vector<8x384xf32> to vector<8x128xf32>
    %198 = vector.extract_strided_slice %196 {offsets = [0, 0], sizes = [8, 128], strides = [1, 1]} : vector<8x384xf32> to vector<8x128xf32>
    %199 = arith.addf %197, %198 : vector<8x128xf32>
    %200 = arith.negf %199 : vector<8x128xf32>
    %201 = math.exp %200 : vector<8x128xf32>
    %cst_34 = arith.constant 1.000000e+00 : f32
    %202 = vector.broadcast %cst_34 : f32 to vector<8x128xf32>
    %203 = arith.addf %202, %201 : vector<8x128xf32>
    %204 = arith.divf %202, %203 : vector<8x128xf32>
    %205 = vector.extract_strided_slice %194 {offsets = [0, 128], sizes = [8, 128], strides = [1, 1]} : vector<8x384xf32> to vector<8x128xf32>
    %206 = vector.extract_strided_slice %196 {offsets = [0, 128], sizes = [8, 128], strides = [1, 1]} : vector<8x384xf32> to vector<8x128xf32>
    %207 = arith.addf %205, %206 : vector<8x128xf32>
    %208 = arith.negf %207 : vector<8x128xf32>
    %209 = math.exp %208 : vector<8x128xf32>
    %cst_35 = arith.constant 1.000000e+00 : f32
    %210 = vector.broadcast %cst_35 : f32 to vector<8x128xf32>
    %211 = arith.addf %210, %209 : vector<8x128xf32>
    %212 = arith.divf %210, %211 : vector<8x128xf32>
    %213 = vector.extract_strided_slice %194 {offsets = [0, 256], sizes = [8, 128], strides = [1, 1]} : vector<8x384xf32> to vector<8x128xf32>
    %214 = vector.extract_strided_slice %196 {offsets = [0, 256], sizes = [8, 128], strides = [1, 1]} : vector<8x384xf32> to vector<8x128xf32>
    %215 = arith.mulf %204, %214 : vector<8x128xf32>
    %216 = arith.addf %213, %215 : vector<8x128xf32>
    %217 = math.tanh %216 : vector<8x128xf32>
    %cst_36 = arith.constant 1.000000e+00 : f32
    %218 = vector.broadcast %cst_36 : f32 to vector<8x128xf32>
    %219 = arith.subf %218, %212 : vector<8x128xf32>
    %220 = arith.mulf %219, %217 : vector<8x128xf32>
    %221 = arith.mulf %212, %192 : vector<8x128xf32>
    %222 = arith.addf %220, %221 : vector<8x128xf32>
    %223 = vector.extract_strided_slice %11 {offsets = [7, 0, 0], sizes = [1, 8, 384], strides = [1, 1, 1]} : vector<8x8x384xf32> to vector<1x8x384xf32>
    %224 = vector.shape_cast %223 : vector<1x8x384xf32> to vector<8x384xf32>
    %cst_37 = arith.constant dense<0.000000e+00> : vector<8x384xf32>
    %225 = tpu.matmul %222, %2, %cst_37 {dimension_numbers = #tpu.dot_dimension_numbers<[1], [0], [0], [1], [0, 0, 1, 1], [], []>} : vector<8x128xf32>, vector<128x384xf32>, vector<8x384xf32> -> vector<8x384xf32>
    %226 = arith.addf %225, %4 : vector<8x384xf32>
    %227 = vector.extract_strided_slice %224 {offsets = [0, 0], sizes = [8, 128], strides = [1, 1]} : vector<8x384xf32> to vector<8x128xf32>
    %228 = vector.extract_strided_slice %226 {offsets = [0, 0], sizes = [8, 128], strides = [1, 1]} : vector<8x384xf32> to vector<8x128xf32>
    %229 = arith.addf %227, %228 : vector<8x128xf32>
    %230 = arith.negf %229 : vector<8x128xf32>
    %231 = math.exp %230 : vector<8x128xf32>
    %cst_38 = arith.constant 1.000000e+00 : f32
    %232 = vector.broadcast %cst_38 : f32 to vector<8x128xf32>
    %233 = arith.addf %232, %231 : vector<8x128xf32>
    %234 = arith.divf %232, %233 : vector<8x128xf32>
    %235 = vector.extract_strided_slice %224 {offsets = [0, 128], sizes = [8, 128], strides = [1, 1]} : vector<8x384xf32> to vector<8x128xf32>
    %236 = vector.extract_strided_slice %226 {offsets = [0, 128], sizes = [8, 128], strides = [1, 1]} : vector<8x384xf32> to vector<8x128xf32>
    %237 = arith.addf %235, %236 : vector<8x128xf32>
    %238 = arith.negf %237 : vector<8x128xf32>
    %239 = math.exp %238 : vector<8x128xf32>
    %cst_39 = arith.constant 1.000000e+00 : f32
    %240 = vector.broadcast %cst_39 : f32 to vector<8x128xf32>
    %241 = arith.addf %240, %239 : vector<8x128xf32>
    %242 = arith.divf %240, %241 : vector<8x128xf32>
    %243 = vector.extract_strided_slice %224 {offsets = [0, 256], sizes = [8, 128], strides = [1, 1]} : vector<8x384xf32> to vector<8x128xf32>
    %244 = vector.extract_strided_slice %226 {offsets = [0, 256], sizes = [8, 128], strides = [1, 1]} : vector<8x384xf32> to vector<8x128xf32>
    %245 = arith.mulf %234, %244 : vector<8x128xf32>
    %246 = arith.addf %243, %245 : vector<8x128xf32>
    %247 = math.tanh %246 : vector<8x128xf32>
    %cst_40 = arith.constant 1.000000e+00 : f32
    %248 = vector.broadcast %cst_40 : f32 to vector<8x128xf32>
    %249 = arith.subf %248, %242 : vector<8x128xf32>
    %250 = arith.mulf %249, %247 : vector<8x128xf32>
    %251 = arith.mulf %242, %222 : vector<8x128xf32>
    %252 = arith.addf %250, %251 : vector<8x128xf32>
    %cst_41 = arith.constant dense<0.000000e+00> : vector<8x384xf32>
    %253 = tpu.matmul %252, %6, %cst_41 {dimension_numbers = #tpu.dot_dimension_numbers<[1], [0], [0], [1], [0, 0, 1, 1], [], []>} : vector<8x128xf32>, vector<128x384xf32>, vector<8x384xf32> -> vector<8x384xf32>
    %254 = arith.addf %253, %5 : vector<8x384xf32>
    %c0_42 = arith.constant 0 : index
    %c0_43 = arith.constant 0 : index
    %255 = vector.load %arg2[%c0_42, %c0_43] : memref<8x384xf32, #tpu.memory_space<vmem>>, vector<8x384xf32>
    tpu.vector_store %arg2[%c0_42, %c0_43], %254 {strides = array<i32>} : memref<8x384xf32, #tpu.memory_space<vmem>>, vector<8x384xf32>,
    return
  }
}

</mosaic_0001>

<llo_original>
// kernel: gru_fc_forward.1
$region0: #{gru_fc_forward.1}
  #allocation0 [shape = 'u32[]', space=smem, size = 0x4, offset = 0x4, fixed_abs, tag = 'smem constant byte address 0x4 - core index']
  #allocation1 [shape = 'u32[144,128]{1,0:T(1,128)}', space=vmem, size = 0x12000, scoped, tag = 'internal scratch']
  %s0 = inlined_call_operand.vmem [shape: f32[64,8], index: 0, kind: input, shape index: {}]
  %s1 = inlined_call_operand.hbm [shape: f32[288,384], index: 1, kind: input, shape index: {}]
  %s2 = inlined_call_operand.vmem [shape: f32[8,384], index: 2, kind: output, shape index: {}]
  %s3 = sld [smem:[#allocation0]]
  $region22: #{gru_fc_forward.1} parent=0
    _
  %s5 = ssub.s32 1, %s3
  %s6 = scalar_select 0, %s5, %s3
  $region1: #{gru_fc_forward.1} parent=0
    #allocation2 [shape = 'u8[442368]{0}', space=vmem, size = 0x6c000, scoped, tag = 'input window, operand 1, single buffered']
    #allocation3 [shape = 's32[1]{0}', space=sflag, size = 0x4, scoped, tag = 'scoped memory for gru_fc_forward.1']
    %7 = vsyncpa [#allocation3], 0
    // Predicated region
    $region2: #{gru_fc_forward.1} parent=1 // pred_check
      _
    $region3: #{gru_fc_forward.1} parent=1 // pred_check_branch
      %9 = sbr.rel (0) target = $region5
    $region4: #{gru_fc_forward.1} parent=1 // pred_region
      _
    $region5: #{gru_fc_forward.1} parent=1 // pred_fallthru
      _
    // Predicated region
    $region6: #{gru_fc_forward.1} parent=1 // pred_check
      _
    $region7: #{gru_fc_forward.1} parent=1 // pred_check_branch
      %11 = sbr.rel (0) target = $region9
    $region8: #{gru_fc_forward.1} parent=1 // pred_region
      %s13 = ssub.s32 13824, 13824
      %14 = vsyncadd [#allocation3], %s13
      %s15 = sshll.u32 [#allocation2], 4
      %s16 = int_to_ptr.vmem [resolvable:$true] %s15
      %21 = dma.hbm_to_vmem [thread:$0]  %s1, 13824, %s16, [#allocation3], 384, 384, 24
    $region9: #{gru_fc_forward.1} parent=1 // pred_fallthru
      _
    // Predicated region
    $region10: #{gru_fc_forward.1} parent=1 // pred_check
      _
    $region11: #{gru_fc_forward.1} parent=1 // pred_check_branch
      %23 = sbr.rel (0) target = $region13
    $region12: #{gru_fc_forward.1} parent=1 // pred_region
      %24 = dma.done [#allocation3], 13824
    $region13: #{gru_fc_forward.1} parent=1 // pred_fallthru
      _
    %v25 = vld [vmem:[%s0] sm:$0xff]
    %v26 = vld [vmem:[%s0 + $0x8] sm:$0xff]
    %v27 = vld [vmem:[%s0 + $0x10] sm:$0xff]
    %v28 = vld [vmem:[%s0 + $0x18] sm:$0xff]
    %v29 = vld [vmem:[%s0 + $0x20] sm:$0xff]
    %v30 = vld [vmem:[%s0 + $0x28] sm:$0xff]
    %v31 = vld [vmem:[%s0 + $0x30] sm:$0xff]
    %v32 = vld [vmem:[%s0 + $0x38] sm:$0xff]
    %v33 = vld [vmem:[#allocation2] sm:$0xff]
    %v34 = vld [vmem:[#allocation2 + $0x8] sm:$0xff]
    %v35 = vld [vmem:[#allocation2 + $0x10] sm:$0xff]
    %v36 = vld [vmem:[#allocation2 + $0x18] sm:$0xff]
    %v37 = vld [vmem:[#allocation2 + $0x20] sm:$0xff]
    %v38 = vld [vmem:[#allocation2 + $0x28] sm:$0xff]
    %v39 = vld [vmem:[#allocation2 + $0x30] sm:$0xff]
    %v40 = vld [vmem:[#allocation2 + $0x38] sm:$0xff]
    %v41 = vld [vmem:[#allocation2 + $0x40] sm:$0xff]
    %v42 = vld [vmem:[#allocation2 + $0x48] sm:$0xff]
    %v43 = vld [vmem:[#allocation2 + $0x50] sm:$0xff]
    %v44 = vld [vmem:[#allocation2 + $0x58] sm:$0xff]
    %v45 = vld [vmem:[#allocation2 + $0x60] sm:$0xff]
    %v46 = vld [vmem:[#allocation2 + $0x68] sm:$0xff]
    %v47 = vld [vmem:[#allocation2 + $0x70] sm:$0xff]
    %v48 = vld [vmem:[#allocation2 + $0x78] sm:$0xff]
    %v49 = vld [vmem:[#allocation2 + $0x80] sm:$0xff]
    %v50 = vld [vmem:[#allocation2 + $0x88] sm:$0xff]
    %v51 = vld [vmem:[#allocation2 + $0x90] sm:$0xff]
    %v52 = vld [vmem:[#allocation2 + $0x98] sm:$0xff]
    %v53 = vld [vmem:[#allocation2 + $0xa0] sm:$0xff]
    %v54 = vld [vmem:[#allocation2 + $0xa8] sm:$0xff]
    %v55 = vld [vmem:[#allocation2 + $0xb0] sm:$0xff]
    %v56 = vld [vmem:[#allocation2 + $0xb8] sm:$0xff]
    %v57 = vld [vmem:[#allocation2 + $0xc0] sm:$0xff]
    %v58 = vld [vmem:[#allocation2 + $0xc8] sm:$0xff]
    %v59 = vld [vmem:[#allocation2 + $0xd0] sm:$0xff]
    %v60 = vld [vmem:[#allocation2 + $0xd8] sm:$0xff]
    %v61 = vld [vmem:[#allocation2 + $0xe0] sm:$0xff]
    %v62 = vld [vmem:[#allocation2 + $0xe8] sm:$0xff]
    %v63 = vld [vmem:[#allocation2 + $0xf0] sm:$0xff]
    %v64 = vld [vmem:[#allocation2 + $0xf8] sm:$0xff]
    %v65 = vld [vmem:[#allocation2 + $0x100] sm:$0xff]
    %v66 = vld [vmem:[#allocation2 + $0x108] sm:$0xff]
    %v67 = vld [vmem:[#allocation2 + $0x110] sm:$0xff]
    %v68 = vld [vmem:[#allocation2 + $0x118] sm:$0xff]
    %v69 = vld [vmem:[#allocation2 + $0x120] sm:$0xff]
    %v70 = vld [vmem:[#allocation2 + $0x128] sm:$0xff]
    %v71 = vld [vmem:[#allocation2 + $0x130] sm:$0xff]
    %v72 = vld [vmem:[#allocation2 + $0x138] sm:$0xff]
    %v73 = vld [vmem:[#allocation2 + $0x140] sm:$0xff]
    %v74 = vld [vmem:[#allocation2 + $0x148] sm:$0xff]
    %v75 = vld [vmem:[#allocation2 + $0x150] sm:$0xff]
    %v76 = vld [vmem:[#allocation2 + $0x158] sm:$0xff]
    %v77 = vld [vmem:[#allocation2 + $0x160] sm:$0xff]
    %v78 = vld [vmem:[#allocation2 + $0x168] sm:$0xff]
    %v79 = vld [vmem:[#allocation2 + $0x170] sm:$0xff]
    %v80 = vld [vmem:[#allocation2 + $0x178] sm:$0xff]
    %v81 = vld [vmem:[#allocation2 + $0x180] sm:$0xff]
    %v82 = vld [vmem:[#allocation2 + $0x188] sm:$0xff]
    %v83 = vld [vmem:[#allocation2 + $0x190] sm:$0xff]
    %v84 = vld [vmem:[#allocation2 + $0x198] sm:$0xff]
    %v85 = vld [vmem:[#allocation2 + $0x1a0] sm:$0xff]
    %v86 = vld [vmem:[#allocation2 + $0x1a8] sm:$0xff]
    %v87 = vld [vmem:[#allocation2 + $0x1b0] sm:$0xff]
    %v88 = vld [vmem:[#allocation2 + $0x1b8] sm:$0xff]
    %v89 = vld [vmem:[#allocation2 + $0x1c0] sm:$0xff]
    %v90 = vld [vmem:[#allocation2 + $0x1c8] sm:$0xff]
    %v91 = vld [vmem:[#allocation2 + $0x1d0] sm:$0xff]
    %v92 = vld [vmem:[#allocation2 + $0x1d8] sm:$0xff]
    %v93 = vld [vmem:[#allocation2 + $0x1e0] sm:$0xff]
    %v94 = vld [vmem:[#allocation2 + $0x1e8] sm:$0xff]
    %v95 = vld [vmem:[#allocation2 + $0x1f0] sm:$0xff]
    %v96 = vld [vmem:[#allocation2 + $0x1f8] sm:$0xff]
    %v97 = vld [vmem:[#allocation2 + $0x200] sm:$0xff]
    %v98 = vld [vmem:[#allocation2 + $0x208] sm:$0xff]
    %v99 = vld [vmem:[#allocation2 + $0x210] sm:$0xff]
    %v100 = vld [vmem:[#allocation2 + $0x218] sm:$0xff]
    %v101 = vld [vmem:[#allocation2 + $0x220] sm:$0xff]
    %v102 = vld [vmem:[#allocation2 + $0x228] sm:$0xff]
    %v103 = vld [vmem:[#allocation2 + $0x230] sm:$0xff]
    %v104 = vld [vmem:[#allocation2 + $0x238] sm:$0xff]
    %v105 = vld [vmem:[#allocation2 + $0x240] sm:$0xff]
    %v106 = vld [vmem:[#allocation2 + $0x248] sm:$0xff]
    %v107 = vld [vmem:[#allocation2 + $0x250] sm:$0xff]
    %v108 = vld [vmem:[#allocation2 + $0x258] sm:$0xff]
    %v109 = vld [vmem:[#allocation2 + $0x260] sm:$0xff]
    %v110 = vld [vmem:[#allocation2 + $0x268] sm:$0xff]
    %v111 = vld [vmem:[#allocation2 + $0x270] sm:$0xff]
    %v112 = vld [vmem:[#allocation2 + $0x278] sm:$0xff]
    %v113 = vld [vmem:[#allocation2 + $0x280] sm:$0xff]
    %v114 = vld [vmem:[#allocation2 + $0x288] sm:$0xff]
    %v115 = vld [vmem:[#allocation2 + $0x290] sm:$0xff]
    %v116 = vld [vmem:[#allocation2 + $0x298] sm:$0xff]
    %v117 = vld [vmem:[#allocation2 + $0x2a0] sm:$0xff]
    %v118 = vld [vmem:[#allocation2 + $0x2a8] sm:$0xff]
    %v119 = vld [vmem:[#allocation2 + $0x2b0] sm:$0xff]
    %v120 = vld [vmem:[#allocation2 + $0x2b8] sm:$0xff]
    %v121 = vld [vmem:[#allocation2 + $0x2c0] sm:$0xff]
    %v122 = vld [vmem:[#allocation2 + $0x2c8] sm:$0xff]
    %v123 = vld [vmem:[#allocation2 + $0x2d0] sm:$0xff]
    %v124 = vld [vmem:[#allocation2 + $0x2d8] sm:$0xff]
    %v125 = vld [vmem:[#allocation2 + $0x2e0] sm:$0xff]
    %v126 = vld [vmem:[#allocation2 + $0x2e8] sm:$0xff]
    %v127 = vld [vmem:[#allocation2 + $0x2f0] sm:$0xff]
    %v128 = vld [vmem:[#allocation2 + $0x2f8] sm:$0xff]
    %v129 = vld [vmem:[#allocation2 + $0x300] sm:$0xff]
    %v130 = vld [vmem:[#allocation2 + $0x308] sm:$0xff]
    %v131 = vld [vmem:[#allocation2 + $0x310] sm:$0xff]
    %v132 = vld [vmem:[#allocation2 + $0x318] sm:$0xff]
    %v133 = vld [vmem:[#allocation2 + $0x320] sm:$0xff]
    %v134 = vld [vmem:[#allocation2 + $0x328] sm:$0xff]
    %v135 = vld [vmem:[#allocation2 + $0x330] sm:$0xff]
    %v136 = vld [vmem:[#allocation2 + $0x338] sm:$0xff]
    %v137 = vld [vmem:[#allocation2 + $0x340] sm:$0xff]
    %v138 = vld [vmem:[#allocation2 + $0x348] sm:$0xff]
    %v139 = vld [vmem:[#allocation2 + $0x350] sm:$0xff]
    %v140 = vld [vmem:[#allocation2 + $0x358] sm:$0xff]
    %vm141 = vcmask 64512
    %v143 = vsel %vm141, %v25, 0
    %v146 = vsel %vm141, %v26, 0
    %v149 = vsel %vm141, %v27, 0
    %v152 = vsel %vm141, %v28, 0
    %v155 = vsel %vm141, %v29, 0
    %v158 = vsel %vm141, %v30, 0
    %v161 = vsel %vm141, %v31, 0
    %v164 = vsel %vm141, %v32, 0
    %166 = vmatprep.subr.mxu0 %v34
    %167 = vmatpush1.msra.mxu0 %v33
    %168 = vmatprep.subr.mxu0 0.0
    %169 = vmatpush1.msra.mxu0 0.0
    %170 = vmatprep.subr.mxu0 0.0
    %171 = vmatpush1.msra.mxu0 0.0
    %172 = vmatprep.subr.mxu0 0.0
    %173 = vmatpush1.msra.mxu0 0.0
    %174 = vmatprep.subr.mxu0 0.0
    %175 = vmatpush1.msra.mxu0 0.0
    %176 = vmatprep.subr.mxu0 0.0
    %177 = vmatpush1.msra.mxu0 0.0
    %178 = vmatprep.subr.mxu0 0.0
    %179 = vmatpush1.msra.mxu0 0.0
    %180 = vmatprep.subr.mxu0 0.0
    %181 = vmatpush1.msra.mxu0 0.0
    %182 = vmatprep.subr.mxu0 0.0
    %183 = vmatpush1.msra.mxu0 0.0
    %184 = vmatprep.subr.mxu0 0.0
    %185 = vmatpush1.msra.mxu0 0.0
    %186 = vmatprep.subr.mxu0 0.0
    %187 = vmatpush1.msra.mxu0 0.0
    %188 = vmatprep.subr.mxu0 0.0
    %189 = vmatpush1.msra.mxu0 0.0
    %190 = vmatprep.subr.mxu0 0.0
    %191 = vmatpush1.msra.mxu0 0.0
    %192 = vmatprep.subr.mxu0 0.0
    %193 = vmatpush1.msra.mxu0 0.0
    %194 = vmatprep.subr.mxu0 0.0
    %195 = vmatpush1.msra.mxu0 0.0
    %196 = vmatprep.subr.mxu0 0.0
    %197 = vmatpush1.msra.mxu0 0.0
    %198 = vmatprep.subr.mxu0 0.0
    %199 = vmatpush1.msra.mxu0 0.0
    %200 = vmatprep.subr.mxu0 0.0
    %201 = vmatpush1.msra.mxu0 0.0
    %202 = vmatprep.subr.mxu0 0.0
    %203 = vmatpush1.msra.mxu0 0.0
    %204 = vmatprep.subr.mxu0 0.0
    %205 = vmatpush1.msra.mxu0 0.0
    %206 = vmatprep.subr.mxu0 0.0
    %207 = vmatpush1.msra.mxu0 0.0
    %208 = vmatprep.subr.mxu0 0.0
    %209 = vmatpush1.msra.mxu0 0.0
    %210 = vmatprep.subr.mxu0 0.0
    %211 = vmatpush1.msra.mxu0 0.0
    %212 = vmatprep.subr.mxu0 0.0
    %213 = vmatpush1.msra.mxu0 0.0
    %214 = vmatprep.subr.mxu0 0.0
    %215 = vmatpush1.msra.mxu0 0.0
    %216 = vmatprep.subr.mxu0 0.0
    %217 = vmatpush1.msra.mxu0 0.0
    %218 = vmatprep.subr.mxu0 0.0
    %219 = vmatpush1.msra.mxu0 0.0
    %220 = vmatprep.subr.mxu0 0.0
    %221 = vmatpush1.msra.mxu0 0.0
    %222 = vmatprep.subr.mxu0 0.0
    %223 = vmatpush1.msra.mxu0 0.0
    %224 = vmatprep.subr.mxu0 0.0
    %225 = vmatpush1.msra.mxu0 0.0
    %226 = vmatprep.subr.mxu0 0.0
    %227 = vmatpush1.msra.mxu0 0.0
    %228 = vmatprep.subr.mxu0 0.0
    %229 = vmatpush1.msra.mxu0 0.0
    %230 = vmatprep.mubr.f32.mxu0 0.0
    %231 = vmatmul.mubr.f32.gmra.mrb[0].mxu0 %v143
    %v232 = vpop.f32.mrb[0].mxu0
    %v233 = vadd.f32 0.0, %v232
    %v234 = vpop.f32.mrb[0].mxu0
    %v235 = vadd.f32 0.0, %v234
    %236 = vmatprep.mubr.f32.mxu0 0.0
    %237 = vmatmul.mubr.f32.gmra.mrb[0].mxu0 %v146
    %v238 = vpop.f32.mrb[0].mxu0
    %v239 = vadd.f32 0.0, %v238
    %v240 = vpop.f32.mrb[0].mxu0
    %v241 = vadd.f32 0.0, %v240
    %242 = vmatprep.mubr.f32.mxu0 0.0
    %243 = vmatmul.mubr.f32.gmra.mrb[0].mxu0 %v149
    %v244 = vpop.f32.mrb[0].mxu0
    %v245 = vadd.f32 0.0, %v244
    %v246 = vpop.f32.mrb[0].mxu0
    %v247 = vadd.f32 0.0, %v246
    %248 = vmatprep.mubr.f32.mxu0 0.0
    %249 = vmatmul.mubr.f32.gmra.mrb[0].mxu0 %v152
    %v250 = vpop.f32.mrb[0].mxu0
    %v251 = vadd.f32 0.0, %v250
    %v252 = vpop.f32.mrb[0].mxu0
    %v253 = vadd.f32 0.0, %v252
    %254 = vmatprep.mubr.f32.mxu0 0.0
    %255 = vmatmul.mubr.f32.gmra.mrb[0].mxu0 %v155
    %v256 = vpop.f32.mrb[0].mxu0
    %v257 = vadd.f32 0.0, %v256
    %v258 = vpop.f32.mrb[0].mxu0
    %v259 = vadd.f32 0.0, %v258
    %260 = vmatprep.mubr.f32.mxu0 0.0
    %261 = vmatmul.mubr.f32.gmra.mrb[0].mxu0 %v158
    %v262 = vpop.f32.mrb[0].mxu0
    %v263 = vadd.f32 0.0, %v262
    %v264 = vpop.f32.mrb[0].mxu0
    %v265 = vadd.f32 0.0, %v264
    %266 = vmatprep.mubr.f32.mxu0 0.0
    %267 = vmatmul.mubr.f32.gmra.mrb[0].mxu0 %v161
    %v268 = vpop.f32.mrb[0].mxu0
    %v269 = vadd.f32 0.0, %v268
    %v270 = vpop.f32.mrb[0].mxu0
    %v271 = vadd.f32 0.0, %v270
    %272 = vmatprep.mubr.f32.mxu0 0.0
    %273 = vmatmul.mubr.f32.gmra.mrb[0].mxu0 %v164
    %v274 = vpop.f32.mrb[0].mxu0
    %v275 = vadd.f32 0.0, %v274
    %v276 = vpop.f32.mrb[0].mxu0
    %v277 = vadd.f32 0.0, %v276
    %278 = vdwg.mxu0
    %279 = vmatprep.subr.mxu0 0.0
    %280 = vmatpush1.msra.mxu0 %v35
    %281 = vmatprep.subr.mxu0 0.0
    %282 = vmatpush1.msra.mxu0 0.0
    %283 = vmatprep.subr.mxu0 0.0
    %284 = vmatpush1.msra.mxu0 0.0
    %285 = vmatprep.subr.mxu0 0.0
    %286 = vmatpush1.msra.mxu0 0.0
    %287 = vmatprep.subr.mxu0 0.0
    %288 = vmatpush1.msra.mxu0 0.0
    %289 = vmatprep.subr.mxu0 0.0
    %290 = vmatpush1.msra.mxu0 0.0
    %291 = vmatprep.subr.mxu0 0.0
    %292 = vmatpush1.msra.mxu0 0.0
    %293 = vmatprep.subr.mxu0 0.0
    %294 = vmatpush1.msra.mxu0 0.0
    %295 = vmatprep.subr.mxu0 0.0
    %296 = vmatpush1.msra.mxu0 0.0
    %297 = vmatprep.subr.mxu0 0.0
    %298 = vmatpush1.msra.mxu0 0.0
    %299 = vmatprep.subr.mxu0 0.0
    %300 = vmatpush1.msra.mxu0 0.0
    %301 = vmatprep.subr.mxu0 0.0
    %302 = vmatpush1.msra.mxu0 0.0
    %303 = vmatprep.subr.mxu0 0.0
    %304 = vmatpush1.msra.mxu0 0.0
    %305 = vmatprep.subr.mxu0 0.0
    %306 = vmatpush1.msra.mxu0 0.0
    %307 = vmatprep.subr.mxu0 0.0
    %308 = vmatpush1.msra.mxu0 0.0
    %309 = vmatprep.subr.mxu0 0.0
    %310 = vmatpush1.msra.mxu0 0.0
    %311 = vmatprep.subr.mxu0 0.0
    %312 = vmatpush1.msra.mxu0 0.0
    %313 = vmatprep.subr.mxu0 0.0
    %314 = vmatpush1.msra.mxu0 0.0
    %315 = vmatprep.subr.mxu0 0.0
    %316 = vmatpush1.msra.mxu0 0.0
    %317 = vmatprep.subr.mxu0 0.0
    %318 = vmatpush1.msra.mxu0 0.0
    %319 = vmatprep.subr.mxu0 0.0
    %320 = vmatpush1.msra.mxu0 0.0
    %321 = vmatprep.subr.mxu0 0.0
    %322 = vmatpush1.msra.mxu0 0.0
    %323 = vmatprep.subr.mxu0 0.0
    %324 = vmatpush1.msra.mxu0 0.0
    %325 = vmatprep.subr.mxu0 0.0
    %326 = vmatpush1.msra.mxu0 0.0
    %327 = vmatprep.subr.mxu0 0.0
    %328 = vmatpush1.msra.mxu0 0.0
    %329 = vmatprep.subr.mxu0 0.0
    %330 = vmatpush1.msra.mxu0 0.0
    %331 = vmatprep.subr.mxu0 0.0
    %332 = vmatpush1.msra.mxu0 0.0
    %333 = vmatprep.subr.mxu0 0.0
    %334 = vmatpush1.msra.mxu0 0.0
    %335 = vmatprep.subr.mxu0 0.0
    %336 = vmatpush1.msra.mxu0 0.0
    %337 = vmatprep.subr.mxu0 0.0
    %338 = vmatpush1.msra.mxu0 0.0
    %339 = vmatprep.subr.mxu0 0.0
    %340 = vmatpush1.msra.mxu0 0.0
    %341 = vmatprep.subr.mxu0 0.0
    %342 = vmatpush1.msra.mxu0 0.0
    %343 = vmatprep.mubr.f32.mxu0 0.0
    %344 = vmatmul.mubr.f32.gmra.mrb[0].mxu0 %v143
    %v345 = vpop.f32.mrb[0].mxu0
    %v346 = vadd.f32 0.0, %v345
    %v347 = vpop.f32.mrb[0].mxu0
    %348 = vmatprep.mubr.f32.mxu0 0.0
    %349 = vmatmul.mubr.f32.gmra.mrb[0].mxu0 %v146
    %v350 = vpop.f32.mrb[0].mxu0
    %v351 = vadd.f32 0.0, %v350
    %v352 = vpop.f32.mrb[0].mxu0
    %353 = vmatprep.mubr.f32.mxu0 0.0
    %354 = vmatmul.mubr.f32.gmra.mrb[0].mxu0 %v149
    %v355 = vpop.f32.mrb[0].mxu0
    %v356 = vadd.f32 0.0, %v355
    %v357 = vpop.f32.mrb[0].mxu0
    %358 = vmatprep.mubr.f32.mxu0 0.0
    %359 = vmatmul.mubr.f32.gmra.mrb[0].mxu0 %v152
    %v360 = vpop.f32.mrb[0].mxu0
    %v361 = vadd.f32 0.0, %v360
    %v362 = vpop.f32.mrb[0].mxu0
    %363 = vmatprep.mubr.f32.mxu0 0.0
    %364 = vmatmul.mubr.f32.gmra.mrb[0].mxu0 %v155
    %v365 = vpop.f32.mrb[0].mxu0
    %v366 = vadd.f32 0.0, %v365
    %v367 = vpop.f32.mrb[0].mxu0
    %368 = vmatprep.mubr.f32.mxu0 0.0
    %369 = vmatmul.mubr.f32.gmra.mrb[0].mxu0 %v158
    %v370 = vpop.f32.mrb[0].mxu0
    %v371 = vadd.f32 0.0, %v370
    %v372 = vpop.f32.mrb[0].mxu0
    %373 = vmatprep.mubr.f32.mxu0 0.0
    %374 = vmatmul.mubr.f32.gmra.mrb[0].mxu0 %v161
    %v375 = vpop.f32.mrb[0].mxu0
    %v376 = vadd.f32 0.0, %v375
    %v377 = vpop.f32.mrb[0].mxu0
    %378 = vmatprep.mubr.f32.mxu0 0.0
    %379 = vmatmul.mubr.f32.gmra.mrb[0].mxu0 %v164
    %v380 = vpop.f32.mrb[0].mxu0
    %v381 = vadd.f32 0.0, %v380
    %v382 = vpop.f32.mrb[0].mxu0
    %383 = vdwg.mxu0
    %v384 = vadd.f32 %v233, %v84
    %v385 = vadd.f32 %v235, %v85
    %v386 = vadd.f32 %v346, %v86
    %v387 = vadd.f32 %v239, %v84
    %v388 = vadd.f32 %v241, %v85
    %v389 = vadd.f32 %v351, %v86
    %v390 = vadd.f32 %v245, %v84
    %v391 = vadd.f32 %v247, %v85
    %v392 = vadd.f32 %v356, %v86
    %v393 = vadd.f32 %v251, %v84
    %v394 = vadd.f32 %v253, %v85
    %v395 = vadd.f32 %v361, %v86
    %v396 = vadd.f32 %v257, %v84
    %v397 = vadd.f32 %v259, %v85
    %v398 = vadd.f32 %v366, %v86
    %v399 = vadd.f32 %v263, %v84
    %v400 = vadd.f32 %v265, %v85
    %v401 = vadd.f32 %v371, %v86
    %v402 = vadd.f32 %v269, %v84
    %v403 = vadd.f32 %v271, %v85
    %v404 = vadd.f32 %v376, %v86
    %v405 = vadd.f32 %v275, %v84
    %v406 = vadd.f32 %v277, %v85
    %v407 = vadd.f32 %v381, %v86
    %408 = vmatprep.subr.mxu0 %v37
    %409 = vmatpush1.msra.mxu0 %v36
    %410 = vmatprep.subr.mxu0 %v40
    %411 = vmatpush1.msra.mxu0 %v39
    %412 = vmatprep.subr.mxu0 %v43
    %413 = vmatpush1.msra.mxu0 %v42
    %414 = vmatprep.subr.mxu0 %v46
    %415 = vmatpush1.msra.mxu0 %v45
    %416 = vmatprep.subr.mxu0 %v49
    %417 = vmatpush1.msra.mxu0 %v48
    %418 = vmatprep.subr.mxu0 %v52
    %419 = vmatpush1.msra.mxu0 %v51
    %420 = vmatprep.subr.mxu0 %v55
    %421 = vmatpush1.msra.mxu0 %v54
    %422 = vmatprep.subr.mxu0 %v58
    %423 = vmatpush1.msra.mxu0 %v57
    %424 = vmatprep.subr.mxu0 %v61
    %425 = vmatpush1.msra.mxu0 %v60
    %426 = vmatprep.subr.mxu0 %v64
    %427 = vmatpush1.msra.mxu0 %v63
    %428 = vmatprep.subr.mxu0 %v67
    %429 = vmatpush1.msra.mxu0 %v66
    %430 = vmatprep.subr.mxu0 %v70
    %431 = vmatpush1.msra.mxu0 %v69
    %432 = vmatprep.subr.mxu0 %v73
    %433 = vmatpush1.msra.mxu0 %v72
    %434 = vmatprep.subr.mxu0 %v76
    %435 = vmatpush1.msra.mxu0 %v75
    %436 = vmatprep.subr.mxu0 %v79
    %437 = vmatpush1.msra.mxu0 %v78
    %438 = vmatprep.subr.mxu0 %v82
    %439 = vmatpush1.msra.mxu0 %v81
    %440 = vmatprep.subr.mxu0 0.0
    %441 = vmatpush1.msra.mxu0 0.0
    %442 = vmatprep.subr.mxu0 0.0
    %443 = vmatpush1.msra.mxu0 0.0
    %444 = vmatprep.subr.mxu0 0.0
    %445 = vmatpush1.msra.mxu0 0.0
    %446 = vmatprep.subr.mxu0 0.0
    %447 = vmatpush1.msra.mxu0 0.0
    %448 = vmatprep.subr.mxu0 0.0
    %449 = vmatpush1.msra.mxu0 0.0
    %450 = vmatprep.subr.mxu0 0.0
    %451 = vmatpush1.msra.mxu0 0.0
    %452 = vmatprep.subr.mxu0 0.0
    %453 = vmatpush1.msra.mxu0 0.0
    %454 = vmatprep.subr.mxu0 0.0
    %455 = vmatpush1.msra.mxu0 0.0
    %456 = vmatprep.subr.mxu0 0.0
    %457 = vmatpush1.msra.mxu0 0.0
    %458 = vmatprep.subr.mxu0 0.0
    %459 = vmatpush1.msra.mxu0 0.0
    %460 = vmatprep.subr.mxu0 0.0
    %461 = vmatpush1.msra.mxu0 0.0
    %462 = vmatprep.subr.mxu0 0.0
    %463 = vmatpush1.msra.mxu0 0.0
    %464 = vmatprep.subr.mxu0 0.0
    %465 = vmatpush1.msra.mxu0 0.0
    %466 = vmatprep.subr.mxu0 0.0
    %467 = vmatpush1.msra.mxu0 0.0
    %468 = vmatprep.subr.mxu0 0.0
    %469 = vmatpush1.msra.mxu0 0.0
    %470 = vmatprep.subr.mxu0 0.0
    %471 = vmatpush1.msra.mxu0 0.0
    %472 = vmatprep.mubr.f32.mxu0 0.0
    %473 = vmatmul.mubr.f32.gmra.mrb[0].mxu0 0.0
    %v474 = vpop.f32.mrb[0].mxu0
    %v475 = vadd.f32 %v87, %v474
    %v476 = vpop.f32.mrb[0].mxu0
    %v477 = vadd.f32 %v88, %v476
    %478 = vdwg.mxu0
    %479 = vmatprep.subr.mxu0 0.0
    %480 = vmatpush1.msra.mxu0 %v38
    %481 = vmatprep.subr.mxu0 0.0
    %482 = vmatpush1.msra.mxu0 %v41
    %483 = vmatprep.subr.mxu0 0.0
    %484 = vmatpush1.msra.mxu0 %v44
    %485 = vmatprep.subr.mxu0 0.0
    %486 = vmatpush1.msra.mxu0 %v47
    %487 = vmatprep.subr.mxu0 0.0
    %488 = vmatpush1.msra.mxu0 %v50
    %489 = vmatprep.subr.mxu0 0.0
    %490 = vmatpush1.msra.mxu0 %v53
    %491 = vmatprep.subr.mxu0 0.0
    %492 = vmatpush1.msra.mxu0 %v56
    %493 = vmatprep.subr.mxu0 0.0
    %494 = vmatpush1.msra.mxu0 %v59
    %495 = vmatprep.subr.mxu0 0.0
    %496 = vmatpush1.msra.mxu0 %v62
    %497 = vmatprep.subr.mxu0 0.0
    %498 = vmatpush1.msra.mxu0 %v65
    %499 = vmatprep.subr.mxu0 0.0
    %500 = vmatpush1.msra.mxu0 %v68
    %501 = vmatprep.subr.mxu0 0.0
    %502 = vmatpush1.msra.mxu0 %v71
    %503 = vmatprep.subr.mxu0 0.0
    %504 = vmatpush1.msra.mxu0 %v74
    %505 = vmatprep.subr.mxu0 0.0
    %506 = vmatpush1.msra.mxu0 %v77
    %507 = vmatprep.subr.mxu0 0.0
    %508 = vmatpush1.msra.mxu0 %v80
    %509 = vmatprep.subr.mxu0 0.0
    %510 = vmatpush1.msra.mxu0 %v83
    %511 = vmatprep.subr.mxu0 0.0
    %512 = vmatpush1.msra.mxu0 0.0
    %513 = vmatprep.subr.mxu0 0.0
    %514 = vmatpush1.msra.mxu0 0.0
    %515 = vmatprep.subr.mxu0 0.0
    %516 = vmatpush1.msra.mxu0 0.0
    %517 = vmatprep.subr.mxu0 0.0
    %518 = vmatpush1.msra.mxu0 0.0
    %519 = vmatprep.subr.mxu0 0.0
    %520 = vmatpush1.msra.mxu0 0.0
    %521 = vmatprep.subr.mxu0 0.0
    %522 = vmatpush1.msra.mxu0 0.0
    %523 = vmatprep.subr.mxu0 0.0
    %524 = vmatpush1.msra.mxu0 0.0
    %525 = vmatprep.subr.mxu0 0.0
    %526 = vmatpush1.msra.mxu0 0.0
    %527 = vmatprep.subr.mxu0 0.0
    %528 = vmatpush1.msra.mxu0 0.0
    %529 = vmatprep.subr.mxu0 0.0
    %530 = vmatpush1.msra.mxu0 0.0
    %531 = vmatprep.subr.mxu0 0.0
    %532 = vmatpush1.msra.mxu0 0.0
    %533 = vmatprep.subr.mxu0 0.0
    %534 = vmatpush1.msra.mxu0 0.0
    %535 = vmatprep.subr.mxu0 0.0
    %536 = vmatpush1.msra.mxu0 0.0
    %537 = vmatprep.subr.mxu0 0.0
    %538 = vmatpush1.msra.mxu0 0.0
    %539 = vmatprep.subr.mxu0 0.0
    %540 = vmatpush1.msra.mxu0 0.0
    %541 = vmatprep.subr.mxu0 0.0
    %542 = vmatpush1.msra.mxu0 0.0
    %543 = vmatprep.mubr.f32.mxu0 0.0
    %544 = vmatmul.mubr.f32.gmra.mrb[0].mxu0 0.0
    %v545 = vpop.f32.mrb[0].mxu0
    %v546 = vadd.f32 %v89, %v545
    %v547 = vpop.f32.mrb[0].mxu0
    %548 = vdwg.mxu0
    %v549 = vadd.f32 %v384, %v475
    %v550 = vxor.u32 %v549, 2147483648
    %v551 = vmul.f32 %v550, 1.442695
    %v552 = vpow.pop %v551
    %v553 = vadd.f32 %v552, 1.0
    %v554 = vrcp.pop %v553
    %v555 = vmul.f32 1.0, %v554
    %v556 = vadd.f32 %v385, %v477
    %v557 = vxor.u32 %v556, 2147483648
    %v558 = vmul.f32 %v557, 1.442695
    %v559 = vpow.pop %v558
    %v560 = vadd.f32 %v559, 1.0
    %v561 = vrcp.pop %v560
    %v562 = vmul.f32 1.0, %v561
    %v563 = vmul.f32 %v555, %v546
    %v564 = vadd.f32 %v386, %v563
    %v565 = vtanh.pop %v564
    %v566 = vsub.f32 1.0, %v562
    %v567 = vmul.f32 %v566, %v565
    %v568 = vmul.f32 %v562, 0.0
    %v569 = vadd.f32 %v567, %v568
    %570 = vmatprep.subr.mxu0 %v37
    %571 = vmatpush1.msra.mxu0 %v36
    %572 = vmatprep.subr.mxu0 %v40
    %573 = vmatpush1.msra.mxu0 %v39
    %574 = vmatprep.subr.mxu0 %v43
    %575 = vmatpush1.msra.mxu0 %v42
    %576 = vmatprep.subr.mxu0 %v46
    %577 = vmatpush1.msra.mxu0 %v45
    %578 = vmatprep.subr.mxu0 %v49
    %579 = vmatpush1.msra.mxu0 %v48
    %580 = vmatprep.subr.mxu0 %v52
    %581 = vmatpush1.msra.mxu0 %v51
    %582 = vmatprep.subr.mxu0 %v55
    %583 = vmatpush1.msra.mxu0 %v54
    %584 = vmatprep.subr.mxu0 %v58
    %585 = vmatpush1.msra.mxu0 %v57
    %586 = vmatprep.subr.mxu0 %v61
    %587 = vmatpush1.msra.mxu0 %v60
    %588 = vmatprep.subr.mxu0 %v64
    %589 = vmatpush1.msra.mxu0 %v63
    %590 = vmatprep.subr.mxu0 %v67
    %591 = vmatpush1.msra.mxu0 %v66
    %592 = vmatprep.subr.mxu0 %v70
    %593 = vmatpush1.msra.mxu0 %v69
    %594 = vmatprep.subr.mxu0 %v73
    %595 = vmatpush1.msra.mxu0 %v72
    %596 = vmatprep.subr.mxu0 %v76
    %597 = vmatpush1.msra.mxu0 %v75
    %598 = vmatprep.subr.mxu0 %v79
    %599 = vmatpush1.msra.mxu0 %v78
    %600 = vmatprep.subr.mxu0 %v82
    %601 = vmatpush1.msra.mxu0 %v81
    %602 = vmatprep.subr.mxu0 0.0
    %603 = vmatpush1.msra.mxu0 0.0
    %604 = vmatprep.subr.mxu0 0.0
    %605 = vmatpush1.msra.mxu0 0.0
    %606 = vmatprep.subr.mxu0 0.0
    %607 = vmatpush1.msra.mxu0 0.0
    %608 = vmatprep.subr.mxu0 0.0
    %609 = vmatpush1.msra.mxu0 0.0
    %610 = vmatprep.subr.mxu0 0.0
    %611 = vmatpush1.msra.mxu0 0.0
    %612 = vmatprep.subr.mxu0 0.0
    %613 = vmatpush1.msra.mxu0 0.0
    %614 = vmatprep.subr.mxu0 0.0
    %615 = vmatpush1.msra.mxu0 0.0
    %616 = vmatprep.subr.mxu0 0.0
    %617 = vmatpush1.msra.mxu0 0.0
    %618 = vmatprep.subr.mxu0 0.0
    %619 = vmatpush1.msra.mxu0 0.0
    %620 = vmatprep.subr.mxu0 0.0
    %621 = vmatpush1.msra.mxu0 0.0
    %622 = vmatprep.subr.mxu0 0.0
    %623 = vmatpush1.msra.mxu0 0.0
    %624 = vmatprep.subr.mxu0 0.0
    %625 = vmatpush1.msra.mxu0 0.0
    %626 = vmatprep.subr.mxu0 0.0
    %627 = vmatpush1.msra.mxu0 0.0
    %628 = vmatprep.subr.mxu0 0.0
    %629 = vmatpush1.msra.mxu0 0.0
    %630 = vmatprep.subr.mxu0 0.0
    %631 = vmatpush1.msra.mxu0 0.0
    %632 = vmatprep.subr.mxu0 0.0
    %633 = vmatpush1.msra.mxu0 0.0
    %634 = vmatprep.mubr.f32.mxu0 0.0
    %635 = vmatmul.mubr.f32.gmra.mrb[0].mxu0 %v569
    %v636 = vpop.f32.mrb[0].mxu0
    %v637 = vadd.f32 %v87, %v636
    %v638 = vpop.f32.mrb[0].mxu0
    %v639 = vadd.f32 %v88, %v638
    %640 = vdwg.mxu0
    %641 = vmatprep.subr.mxu0 0.0
    %642 = vmatpush1.msra.mxu0 %v38
    %643 = vmatprep.subr.mxu0 0.0
    %644 = vmatpush1.msra.mxu0 %v41
    %645 = vmatprep.subr.mxu0 0.0
    %646 = vmatpush1.msra.mxu0 %v44
    %647 = vmatprep.subr.mxu0 0.0
    %648 = vmatpush1.msra.mxu0 %v47
    %649 = vmatprep.subr.mxu0 0.0
    %650 = vmatpush1.msra.mxu0 %v50
    %651 = vmatprep.subr.mxu0 0.0
    %652 = vmatpush1.msra.mxu0 %v53
    %653 = vmatprep.subr.mxu0 0.0
    %654 = vmatpush1.msra.mxu0 %v56
    %655 = vmatprep.subr.mxu0 0.0
    %656 = vmatpush1.msra.mxu0 %v59
    %657 = vmatprep.subr.mxu0 0.0
    %658 = vmatpush1.msra.mxu0 %v62
    %659 = vmatprep.subr.mxu0 0.0
    %660 = vmatpush1.msra.mxu0 %v65
    %661 = vmatprep.subr.mxu0 0.0
    %662 = vmatpush1.msra.mxu0 %v68
    %663 = vmatprep.subr.mxu0 0.0
    %664 = vmatpush1.msra.mxu0 %v71
    %665 = vmatprep.subr.mxu0 0.0
    %666 = vmatpush1.msra.mxu0 %v74
    %667 = vmatprep.subr.mxu0 0.0
    %668 = vmatpush1.msra.mxu0 %v77
    %669 = vmatprep.subr.mxu0 0.0
    %670 = vmatpush1.msra.mxu0 %v80
    %671 = vmatprep.subr.mxu0 0.0
    %672 = vmatpush1.msra.mxu0 %v83
    %673 = vmatprep.subr.mxu0 0.0
    %674 = vmatpush1.msra.mxu0 0.0
    %675 = vmatprep.subr.mxu0 0.0
    %676 = vmatpush1.msra.mxu0 0.0
    %677 = vmatprep.subr.mxu0 0.0
    %678 = vmatpush1.msra.mxu0 0.0
    %679 = vmatprep.subr.mxu0 0.0
    %680 = vmatpush1.msra.mxu0 0.0
    %681 = vmatprep.subr.mxu0 0.0
    %682 = vmatpush1.msra.mxu0 0.0
    %683 = vmatprep.subr.mxu0 0.0
    %684 = vmatpush1.msra.mxu0 0.0
    %685 = vmatprep.subr.mxu0 0.0
    %686 = vmatpush1.msra.mxu0 0.0
    %687 = vmatprep.subr.mxu0 0.0
    %688 = vmatpush1.msra.mxu0 0.0
    %689 = vmatprep.subr.mxu0 0.0
    %690 = vmatpush1.msra.mxu0 0.0
    %691 = vmatprep.subr.mxu0 0.0
    %692 = vmatpush1.msra.mxu0 0.0
    %693 = vmatprep.subr.mxu0 0.0
    %694 = vmatpush1.msra.mxu0 0.0
    %695 = vmatprep.subr.mxu0 0.0
    %696 = vmatpush1.msra.mxu0 0.0
    %697 = vmatprep.subr.mxu0 0.0
    %698 = vmatpush1.msra.mxu0 0.0
    %699 = vmatprep.subr.mxu0 0.0
    %700 = vmatpush1.msra.mxu0 0.0
    %701 = vmatprep.subr.mxu0 0.0
    %702 = vmatpush1.msra.mxu0 0.0
    %703 = vmatprep.subr.mxu0 0.0
    %704 = vmatpush1.msra.mxu0 0.0
    %705 = vmatprep.mubr.f32.mxu0 0.0
    %706 = vmatmul.mubr.f32.gmra.mrb[0].mxu0 %v569
    %v707 = vpop.f32.mrb[0].mxu0
    %v708 = vadd.f32 %v89, %v707
    %v709 = vpop.f32.mrb[0].mxu0
    %710 = vdwg.mxu0
    %v711 = vadd.f32 %v387, %v637
    %v712 = vxor.u32 %v711, 2147483648
    %v713 = vmul.f32 %v712, 1.442695
    %v714 = vpow.pop %v713
    %v715 = vadd.f32 %v714, 1.0
    %v716 = vrcp.pop %v715
    %v717 = vmul.f32 1.0, %v716
    %v718 = vadd.f32 %v388, %v639
    %v719 = vxor.u32 %v718, 2147483648
    %v720 = vmul.f32 %v719, 1.442695
    %v721 = vpow.pop %v720
    %v722 = vadd.f32 %v721, 1.0
    %v723 = vrcp.pop %v722
    %v724 = vmul.f32 1.0, %v723
    %v725 = vmul.f32 %v717, %v708
    %v726 = vadd.f32 %v389, %v725
    %v727 = vtanh.pop %v726
    %v728 = vsub.f32 1.0, %v724
    %v729 = vmul.f32 %v728, %v727
    %v730 = vmul.f32 %v724, %v569
    %v731 = vadd.f32 %v729, %v730
    %732 = vmatprep.subr.mxu0 %v37
    %733 = vmatpush1.msra.mxu0 %v36
    %734 = vmatprep.subr.mxu0 %v40
    %735 = vmatpush1.msra.mxu0 %v39
    %736 = vmatprep.subr.mxu0 %v43
    %737 = vmatpush1.msra.mxu0 %v42
    %738 = vmatprep.subr.mxu0 %v46
    %739 = vmatpush1.msra.mxu0 %v45
    %740 = vmatprep.subr.mxu0 %v49
    %741 = vmatpush1.msra.mxu0 %v48
    %742 = vmatprep.subr.mxu0 %v52
    %743 = vmatpush1.msra.mxu0 %v51
    %744 = vmatprep.subr.mxu0 %v55
    %745 = vmatpush1.msra.mxu0 %v54
    %746 = vmatprep.subr.mxu0 %v58
    %747 = vmatpush1.msra.mxu0 %v57
    %748 = vmatprep.subr.mxu0 %v61
    %749 = vmatpush1.msra.mxu0 %v60
    %750 = vmatprep.subr.mxu0 %v64
    %751 = vmatpush1.msra.mxu0 %v63
    %752 = vmatprep.subr.mxu0 %v67
    %753 = vmatpush1.msra.mxu0 %v66
    %754 = vmatprep.subr.mxu0 %v70
    %755 = vmatpush1.msra.mxu0 %v69
    %756 = vmatprep.subr.mxu0 %v73
    %757 = vmatpush1.msra.mxu0 %v72
    %758 = vmatprep.subr.mxu0 %v76
    %759 = vmatpush1.msra.mxu0 %v75
    %760 = vmatprep.subr.mxu0 %v79
    %761 = vmatpush1.msra.mxu0 %v78
    %762 = vmatprep.subr.mxu0 %v82
    %763 = vmatpush1.msra.mxu0 %v81
    %764 = vmatprep.subr.mxu0 0.0
    %765 = vmatpush1.msra.mxu0 0.0
    %766 = vmatprep.subr.mxu0 0.0
    %767 = vmatpush1.msra.mxu0 0.0
    %768 = vmatprep.subr.mxu0 0.0
    %769 = vmatpush1.msra.mxu0 0.0
    %770 = vmatprep.subr.mxu0 0.0
    %771 = vmatpush1.msra.mxu0 0.0
    %772 = vmatprep.subr.mxu0 0.0
    %773 = vmatpush1.msra.mxu0 0.0
    %774 = vmatprep.subr.mxu0 0.0
    %775 = vmatpush1.msra.mxu0 0.0
    %776 = vmatprep.subr.mxu0 0.0
    %777 = vmatpush1.msra.mxu0 0.0
    %778 = vmatprep.subr.mxu0 0.0
    %779 = vmatpush1.msra.mxu0 0.0
    %780 = vmatprep.subr.mxu0 0.0
    %781 = vmatpush1.msra.mxu0 0.0
    %782 = vmatprep.subr.mxu0 0.0
    %783 = vmatpush1.msra.mxu0 0.0
    %784 = vmatprep.subr.mxu0 0.0
    %785 = vmatpush1.msra.mxu0 0.0
    %786 = vmatprep.subr.mxu0 0.0
    %787 = vmatpush1.msra.mxu0 0.0
    %788 = vmatprep.subr.mxu0 0.0
    %789 = vmatpush1.msra.mxu0 0.0
    %790 = vmatprep.subr.mxu0 0.0
    %791 = vmatpush1.msra.mxu0 0.0
    %792 = vmatprep.subr.mxu0 0.0
    %793 = vmatpush1.msra.mxu0 0.0
    %794 = vmatprep.subr.mxu0 0.0
    %795 = vmatpush1.msra.mxu0 0.0
    %796 = vmatprep.mubr.f32.mxu0 0.0
    %797 = vmatmul.mubr.f32.gmra.mrb[0].mxu0 %v731
    %v798 = vpop.f32.mrb[0].mxu0
    %v799 = vadd.f32 %v87, %v798
    %v800 = vpop.f32.mrb[0].mxu0
    %v801 = vadd.f32 %v88, %v800
    %802 = vdwg.mxu0
    %803 = vmatprep.subr.mxu0 0.0
    %804 = vmatpush1.msra.mxu0 %v38
    %805 = vmatprep.subr.mxu0 0.0
    %806 = vmatpush1.msra.mxu0 %v41
    %807 = vmatprep.subr.mxu0 0.0
    %808 = vmatpush1.msra.mxu0 %v44
    %809 = vmatprep.subr.mxu0 0.0
    %810 = vmatpush1.msra.mxu0 %v47
    %811 = vmatprep.subr.mxu0 0.0
    %812 = vmatpush1.msra.mxu0 %v50
    %813 = vmatprep.subr.mxu0 0.0
    %814 = vmatpush1.msra.mxu0 %v53
    %815 = vmatprep.subr.mxu0 0.0
    %816 = vmatpush1.msra.mxu0 %v56
    %817 = vmatprep.subr.mxu0 0.0
    %818 = vmatpush1.msra.mxu0 %v59
    %819 = vmatprep.subr.mxu0 0.0
    %820 = vmatpush1.msra.mxu0 %v62
    %821 = vmatprep.subr.mxu0 0.0
    %822 = vmatpush1.msra.mxu0 %v65
    %823 = vmatprep.subr.mxu0 0.0
    %824 = vmatpush1.msra.mxu0 %v68
    %825 = vmatprep.subr.mxu0 0.0
    %826 = vmatpush1.msra.mxu0 %v71
    %827 = vmatprep.subr.mxu0 0.0
    %828 = vmatpush1.msra.mxu0 %v74
    %829 = vmatprep.subr.mxu0 0.0
    %830 = vmatpush1.msra.mxu0 %v77
    %831 = vmatprep.subr.mxu0 0.0
    %832 = vmatpush1.msra.mxu0 %v80
    %833 = vmatprep.subr.mxu0 0.0
    %834 = vmatpush1.msra.mxu0 %v83
    %835 = vmatprep.subr.mxu0 0.0
    %836 = vmatpush1.msra.mxu0 0.0
    %837 = vmatprep.subr.mxu0 0.0
    %838 = vmatpush1.msra.mxu0 0.0
    %839 = vmatprep.subr.mxu0 0.0
    %840 = vmatpush1.msra.mxu0 0.0
    %841 = vmatprep.subr.mxu0 0.0
    %842 = vmatpush1.msra.mxu0 0.0
    %843 = vmatprep.subr.mxu0 0.0
    %844 = vmatpush1.msra.mxu0 0.0
    %845 = vmatprep.subr.mxu0 0.0
    %846 = vmatpush1.msra.mxu0 0.0
    %847 = vmatprep.subr.mxu0 0.0
    %848 = vmatpush1.msra.mxu0 0.0
    %849 = vmatprep.subr.mxu0 0.0
    %850 = vmatpush1.msra.mxu0 0.0
    %851 = vmatprep.subr.mxu0 0.0
    %852 = vmatpush1.msra.mxu0 0.0
    %853 = vmatprep.subr.mxu0 0.0
    %854 = vmatpush1.msra.mxu0 0.0
    %855 = vmatprep.subr.mxu0 0.0
    %856 = vmatpush1.msra.mxu0 0.0
    %857 = vmatprep.subr.mxu0 0.0
    %858 = vmatpush1.msra.mxu0 0.0
    %859 = vmatprep.subr.mxu0 0.0
    %860 = vmatpush1.msra.mxu0 0.0
    %861 = vmatprep.subr.mxu0 0.0
    %862 = vmatpush1.msra.mxu0 0.0
    %863 = vmatprep.subr.mxu0 0.0
    %864 = vmatpush1.msra.mxu0 0.0
    %865 = vmatprep.subr.mxu0 0.0
    %866 = vmatpush1.msra.mxu0 0.0
    %867 = vmatprep.mubr.f32.mxu0 0.0
    %868 = vmatmul.mubr.f32.gmra.mrb[0].mxu0 %v731
    %v869 = vpop.f32.mrb[0].mxu0
    %v870 = vadd.f32 %v89, %v869
    %v871 = vpop.f32.mrb[0].mxu0
    %872 = vdwg.mxu0
    %v873 = vadd.f32 %v390, %v799
    %v874 = vxor.u32 %v873, 2147483648
    %v875 = vmul.f32 %v874, 1.442695
    %v876 = vpow.pop %v875
    %v877 = vadd.f32 %v876, 1.0
    %v878 = vrcp.pop %v877
    %v879 = vmul.f32 1.0, %v878
    %v880 = vadd.f32 %v391, %v801
    %v881 = vxor.u32 %v880, 2147483648
    %v882 = vmul.f32 %v881, 1.442695
    %v883 = vpow.pop %v882
    %v884 = vadd.f32 %v883, 1.0
    %v885 = vrcp.pop %v884
    %v886 = vmul.f32 1.0, %v885
    %v887 = vmul.f32 %v879, %v870
    %v888 = vadd.f32 %v392, %v887
    %v889 = vtanh.pop %v888
    %v890 = vsub.f32 1.0, %v886
    %v891 = vmul.f32 %v890, %v889
    %v892 = vmul.f32 %v886, %v731
    %v893 = vadd.f32 %v891, %v892
    %894 = vmatprep.subr.mxu0 %v37
    %895 = vmatpush1.msra.mxu0 %v36
    %896 = vmatprep.subr.mxu0 %v40
    %897 = vmatpush1.msra.mxu0 %v39
    %898 = vmatprep.subr.mxu0 %v43
    %899 = vmatpush1.msra.mxu0 %v42
    %900 = vmatprep.subr.mxu0 %v46
    %901 = vmatpush1.msra.mxu0 %v45
    %902 = vmatprep.subr.mxu0 %v49
    %903 = vmatpush1.msra.mxu0 %v48
    %904 = vmatprep.subr.mxu0 %v52
    %905 = vmatpush1.msra.mxu0 %v51
    %906 = vmatprep.subr.mxu0 %v55
    %907 = vmatpush1.msra.mxu0 %v54
    %908 = vmatprep.subr.mxu0 %v58
    %909 = vmatpush1.msra.mxu0 %v57
    %910 = vmatprep.subr.mxu0 %v61
    %911 = vmatpush1.msra.mxu0 %v60
    %912 = vmatprep.subr.mxu0 %v64
    %913 = vmatpush1.msra.mxu0 %v63
    %914 = vmatprep.subr.mxu0 %v67
    %915 = vmatpush1.msra.mxu0 %v66
    %916 = vmatprep.subr.mxu0 %v70
    %917 = vmatpush1.msra.mxu0 %v69
    %918 = vmatprep.subr.mxu0 %v73
    %919 = vmatpush1.msra.mxu0 %v72
    %920 = vmatprep.subr.mxu0 %v76
    %921 = vmatpush1.msra.mxu0 %v75
    %922 = vmatprep.subr.mxu0 %v79
    %923 = vmatpush1.msra.mxu0 %v78
    %924 = vmatprep.subr.mxu0 %v82
    %925 = vmatpush1.msra.mxu0 %v81
    %926 = vmatprep.subr.mxu0 0.0
    %927 = vmatpush1.msra.mxu0 0.0
    %928 = vmatprep.subr.mxu0 0.0
    %929 = vmatpush1.msra.mxu0 0.0
    %930 = vmatprep.subr.mxu0 0.0
    %931 = vmatpush1.msra.mxu0 0.0
    %932 = vmatprep.subr.mxu0 0.0
    %933 = vmatpush1.msra.mxu0 0.0
    %934 = vmatprep.subr.mxu0 0.0
    %935 = vmatpush1.msra.mxu0 0.0
    %936 = vmatprep.subr.mxu0 0.0
    %937 = vmatpush1.msra.mxu0 0.0
    %938 = vmatprep.subr.mxu0 0.0
    %939 = vmatpush1.msra.mxu0 0.0
    %940 = vmatprep.subr.mxu0 0.0
    %941 = vmatpush1.msra.mxu0 0.0
    %942 = vmatprep.subr.mxu0 0.0
    %943 = vmatpush1.msra.mxu0 0.0
    %944 = vmatprep.subr.mxu0 0.0
    %945 = vmatpush1.msra.mxu0 0.0
    %946 = vmatprep.subr.mxu0 0.0
    %947 = vmatpush1.msra.mxu0 0.0
    %948 = vmatprep.subr.mxu0 0.0
    %949 = vmatpush1.msra.mxu0 0.0
    %950 = vmatprep.subr.mxu0 0.0
    %951 = vmatpush1.msra.mxu0 0.0
    %952 = vmatprep.subr.mxu0 0.0
    %953 = vmatpush1.msra.mxu0 0.0
    %954 = vmatprep.subr.mxu0 0.0
    %955 = vmatpush1.msra.mxu0 0.0
    %956 = vmatprep.subr.mxu0 0.0
    %957 = vmatpush1.msra.mxu0 0.0
    %958 = vmatprep.mubr.f32.mxu0 0.0
    %959 = vmatmul.mubr.f32.gmra.mrb[0].mxu0 %v893
    %v960 = vpop.f32.mrb[0].mxu0
    %v961 = vadd.f32 %v87, %v960
    %v962 = vpop.f32.mrb[0].mxu0
    %v963 = vadd.f32 %v88, %v962
    %964 = vdwg.mxu0
    %965 = vmatprep.subr.mxu0 0.0
    %966 = vmatpush1.msra.mxu0 %v38
    %967 = vmatprep.subr.mxu0 0.0
    %968 = vmatpush1.msra.mxu0 %v41
    %969 = vmatprep.subr.mxu0 0.0
    %970 = vmatpush1.msra.mxu0 %v44
    %971 = vmatprep.subr.mxu0 0.0
    %972 = vmatpush1.msra.mxu0 %v47
    %973 = vmatprep.subr.mxu0 0.0
    %974 = vmatpush1.msra.mxu0 %v50
    %975 = vmatprep.subr.mxu0 0.0
    %976 = vmatpush1.msra.mxu0 %v53
    %977 = vmatprep.subr.mxu0 0.0
    %978 = vmatpush1.msra.mxu0 %v56
    %979 = vmatprep.subr.mxu0 0.0
    %980 = vmatpush1.msra.mxu0 %v59
    %981 = vmatprep.subr.mxu0 0.0
    %982 = vmatpush1.msra.mxu0 %v62
    %983 = vmatprep.subr.mxu0 0.0
    %984 = vmatpush1.msra.mxu0 %v65
    %985 = vmatprep.subr.mxu0 0.0
    %986 = vmatpush1.msra.mxu0 %v68
    %987 = vmatprep.subr.mxu0 0.0
    %988 = vmatpush1.msra.mxu0 %v71
    %989 = vmatprep.subr.mxu0 0.0
    %990 = vmatpush1.msra.mxu0 %v74
    %991 = vmatprep.subr.mxu0 0.0
    %992 = vmatpush1.msra.mxu0 %v77
    %993 = vmatprep.subr.mxu0 0.0
    %994 = vmatpush1.msra.mxu0 %v80
    %995 = vmatprep.subr.mxu0 0.0
    %996 = vmatpush1.msra.mxu0 %v83
    %997 = vmatprep.subr.mxu0 0.0
    %998 = vmatpush1.msra.mxu0 0.0
    %999 = vmatprep.subr.mxu0 0.0
    %1000 = vmatpush1.msra.mxu0 0.0
    %1001 = vmatprep.subr.mxu0 0.0
    %1002 = vmatpush1.msra.mxu0 0.0
    %1003 = vmatprep.subr.mxu0 0.0
    %1004 = vmatpush1.msra.mxu0 0.0
    %1005 = vmatprep.subr.mxu0 0.0
    %1006 = vmatpush1.msra.mxu0 0.0
    %1007 = vmatprep.subr.mxu0 0.0
    %1008 = vmatpush1.msra.mxu0 0.0
    %1009 = vmatprep.subr.mxu0 0.0
    %1010 = vmatpush1.msra.mxu0 0.0
    %1011 = vmatprep.subr.mxu0 0.0
    %1012 = vmatpush1.msra.mxu0 0.0
    %1013 = vmatprep.subr.mxu0 0.0
    %1014 = vmatpush1.msra.mxu0 0.0
    %1015 = vmatprep.subr.mxu0 0.0
    %1016 = vmatpush1.msra.mxu0 0.0
    %1017 = vmatprep.subr.mxu0 0.0
    %1018 = vmatpush1.msra.mxu0 0.0
    %1019 = vmatprep.subr.mxu0 0.0
    %1020 = vmatpush1.msra.mxu0 0.0
    %1021 = vmatprep.subr.mxu0 0.0
    %1022 = vmatpush1.msra.mxu0 0.0
    %1023 = vmatprep.subr.mxu0 0.0
    %1024 = vmatpush1.msra.mxu0 0.0
    %1025 = vmatprep.subr.mxu0 0.0
    %1026 = vmatpush1.msra.mxu0 0.0
    %1027 = vmatprep.subr.mxu0 0.0
    %1028 = vmatpush1.msra.mxu0 0.0
    %1029 = vmatprep.mubr.f32.mxu0 0.0
    %1030 = vmatmul.mubr.f32.gmra.mrb[0].mxu0 %v893
    %v1031 = vpop.f32.mrb[0].mxu0
    %v1032 = vadd.f32 %v89, %v1031
    %v1033 = vpop.f32.mrb[0].mxu0
    %1034 = vdwg.mxu0
    %v1035 = vadd.f32 %v393, %v961
    %v1036 = vxor.u32 %v1035, 2147483648
    %v1037 = vmul.f32 %v1036, 1.442695
    %v1038 = vpow.pop %v1037
    %v1039 = vadd.f32 %v1038, 1.0
    %v1040 = vrcp.pop %v1039
    %v1041 = vmul.f32 1.0, %v1040
    %v1042 = vadd.f32 %v394, %v963
    %v1043 = vxor.u32 %v1042, 2147483648
    %v1044 = vmul.f32 %v1043, 1.442695
    %v1045 = vpow.pop %v1044
    %v1046 = vadd.f32 %v1045, 1.0
    %v1047 = vrcp.pop %v1046
    %v1048 = vmul.f32 1.0, %v1047
    %v1049 = vmul.f32 %v1041, %v1032
    %v1050 = vadd.f32 %v395, %v1049
    %v1051 = vtanh.pop %v1050
    %v1052 = vsub.f32 1.0, %v1048
    %v1053 = vmul.f32 %v1052, %v1051
    %v1054 = vmul.f32 %v1048, %v893
    %v1055 = vadd.f32 %v1053, %v1054
    %1056 = vmatprep.subr.mxu0 %v37
    %1057 = vmatpush1.msra.mxu0 %v36
    %1058 = vmatprep.subr.mxu0 %v40
    %1059 = vmatpush1.msra.mxu0 %v39
    %1060 = vmatprep.subr.mxu0 %v43
    %1061 = vmatpush1.msra.mxu0 %v42
    %1062 = vmatprep.subr.mxu0 %v46
    %1063 = vmatpush1.msra.mxu0 %v45
    %1064 = vmatprep.subr.mxu0 %v49
    %1065 = vmatpush1.msra.mxu0 %v48
    %1066 = vmatprep.subr.mxu0 %v52
    %1067 = vmatpush1.msra.mxu0 %v51
    %1068 = vmatprep.subr.mxu0 %v55
    %1069 = vmatpush1.msra.mxu0 %v54
    %1070 = vmatprep.subr.mxu0 %v58
    %1071 = vmatpush1.msra.mxu0 %v57
    %1072 = vmatprep.subr.mxu0 %v61
    %1073 = vmatpush1.msra.mxu0 %v60
    %1074 = vmatprep.subr.mxu0 %v64
    %1075 = vmatpush1.msra.mxu0 %v63
    %1076 = vmatprep.subr.mxu0 %v67
    %1077 = vmatpush1.msra.mxu0 %v66
    %1078 = vmatprep.subr.mxu0 %v70
    %1079 = vmatpush1.msra.mxu0 %v69
    %1080 = vmatprep.subr.mxu0 %v73
    %1081 = vmatpush1.msra.mxu0 %v72
    %1082 = vmatprep.subr.mxu0 %v76
    %1083 = vmatpush1.msra.mxu0 %v75
    %1084 = vmatprep.subr.mxu0 %v79
    %1085 = vmatpush1.msra.mxu0 %v78
    %1086 = vmatprep.subr.mxu0 %v82
    %1087 = vmatpush1.msra.mxu0 %v81
    %1088 = vmatprep.subr.mxu0 0.0
    %1089 = vmatpush1.msra.mxu0 0.0
    %1090 = vmatprep.subr.mxu0 0.0
    %1091 = vmatpush1.msra.mxu0 0.0
    %1092 = vmatprep.subr.mxu0 0.0
    %1093 = vmatpush1.msra.mxu0 0.0
    %1094 = vmatprep.subr.mxu0 0.0
    %1095 = vmatpush1.msra.mxu0 0.0
    %1096 = vmatprep.subr.mxu0 0.0
    %1097 = vmatpush1.msra.mxu0 0.0
    %1098 = vmatprep.subr.mxu0 0.0
    %1099 = vmatpush1.msra.mxu0 0.0
    %1100 = vmatprep.subr.mxu0 0.0
    %1101 = vmatpush1.msra.mxu0 0.0
    %1102 = vmatprep.subr.mxu0 0.0
    %1103 = vmatpush1.msra.mxu0 0.0
    %1104 = vmatprep.subr.mxu0 0.0
    %1105 = vmatpush1.msra.mxu0 0.0
    %1106 = vmatprep.subr.mxu0 0.0
    %1107 = vmatpush1.msra.mxu0 0.0
    %1108 = vmatprep.subr.mxu0 0.0
    %1109 = vmatpush1.msra.mxu0 0.0
    %1110 = vmatprep.subr.mxu0 0.0
    %1111 = vmatpush1.msra.mxu0 0.0
    %1112 = vmatprep.subr.mxu0 0.0
    %1113 = vmatpush1.msra.mxu0 0.0
    %1114 = vmatprep.subr.mxu0 0.0
    %1115 = vmatpush1.msra.mxu0 0.0
    %1116 = vmatprep.subr.mxu0 0.0
    %1117 = vmatpush1.msra.mxu0 0.0
    %1118 = vmatprep.subr.mxu0 0.0
    %1119 = vmatpush1.msra.mxu0 0.0
    %1120 = vmatprep.mubr.f32.mxu0 0.0
    %1121 = vmatmul.mubr.f32.gmra.mrb[0].mxu0 %v1055
    %v1122 = vpop.f32.mrb[0].mxu0
    %v1123 = vadd.f32 %v87, %v1122
    %v1124 = vpop.f32.mrb[0].mxu0
    %v1125 = vadd.f32 %v88, %v1124
    %1126 = vdwg.mxu0
    %1127 = vmatprep.subr.mxu0 0.0
    %1128 = vmatpush1.msra.mxu0 %v38
    %1129 = vmatprep.subr.mxu0 0.0
    %1130 = vmatpush1.msra.mxu0 %v41
    %1131 = vmatprep.subr.mxu0 0.0
    %1132 = vmatpush1.msra.mxu0 %v44
    %1133 = vmatprep.subr.mxu0 0.0
    %1134 = vmatpush1.msra.mxu0 %v47
    %1135 = vmatprep.subr.mxu0 0.0
    %1136 = vmatpush1.msra.mxu0 %v50
    %1137 = vmatprep.subr.mxu0 0.0
    %1138 = vmatpush1.msra.mxu0 %v53
    %1139 = vmatprep.subr.mxu0 0.0
    %1140 = vmatpush1.msra.mxu0 %v56
    %1141 = vmatprep.subr.mxu0 0.0
    %1142 = vmatpush1.msra.mxu0 %v59
    %1143 = vmatprep.subr.mxu0 0.0
    %1144 = vmatpush1.msra.mxu0 %v62
    %1145 = vmatprep.subr.mxu0 0.0
    %1146 = vmatpush1.msra.mxu0 %v65
    %1147 = vmatprep.subr.mxu0 0.0
    %1148 = vmatpush1.msra.mxu0 %v68
    %1149 = vmatprep.subr.mxu0 0.0
    %1150 = vmatpush1.msra.mxu0 %v71
    %1151 = vmatprep.subr.mxu0 0.0
    %1152 = vmatpush1.msra.mxu0 %v74
    %1153 = vmatprep.subr.mxu0 0.0
    %1154 = vmatpush1.msra.mxu0 %v77
    %1155 = vmatprep.subr.mxu0 0.0
    %1156 = vmatpush1.msra.mxu0 %v80
    %1157 = vmatprep.subr.mxu0 0.0
    %1158 = vmatpush1.msra.mxu0 %v83
    %1159 = vmatprep.subr.mxu0 0.0
    %1160 = vmatpush1.msra.mxu0 0.0
    %1161 = vmatprep.subr.mxu0 0.0
    %1162 = vmatpush1.msra.mxu0 0.0
    %1163 = vmatprep.subr.mxu0 0.0
    %1164 = vmatpush1.msra.mxu0 0.0
    %1165 = vmatprep.subr.mxu0 0.0
    %1166 = vmatpush1.msra.mxu0 0.0
    %1167 = vmatprep.subr.mxu0 0.0
    %1168 = vmatpush1.msra.mxu0 0.0
    %1169 = vmatprep.subr.mxu0 0.0
    %1170 = vmatpush1.msra.mxu0 0.0
    %1171 = vmatprep.subr.mxu0 0.0
    %1172 = vmatpush1.msra.mxu0 0.0
    %1173 = vmatprep.subr.mxu0 0.0
    %1174 = vmatpush1.msra.mxu0 0.0
    %1175 = vmatprep.subr.mxu0 0.0
    %1176 = vmatpush1.msra.mxu0 0.0
    %1177 = vmatprep.subr.mxu0 0.0
    %1178 = vmatpush1.msra.mxu0 0.0
    %1179 = vmatprep.subr.mxu0 0.0
    %1180 = vmatpush1.msra.mxu0 0.0
    %1181 = vmatprep.subr.mxu0 0.0
    %1182 = vmatpush1.msra.mxu0 0.0
    %1183 = vmatprep.subr.mxu0 0.0
    %1184 = vmatpush1.msra.mxu0 0.0
    %1185 = vmatprep.subr.mxu0 0.0
    %1186 = vmatpush1.msra.mxu0 0.0
    %1187 = vmatprep.subr.mxu0 0.0
    %1188 = vmatpush1.msra.mxu0 0.0
    %1189 = vmatprep.subr.mxu0 0.0
    %1190 = vmatpush1.msra.mxu0 0.0
    %1191 = vmatprep.mubr.f32.mxu0 0.0
    %1192 = vmatmul.mubr.f32.gmra.mrb[0].mxu0 %v1055
    %v1193 = vpop.f32.mrb[0].mxu0
    %v1194 = vadd.f32 %v89, %v1193
    %v1195 = vpop.f32.mrb[0].mxu0
    %1196 = vdwg.mxu0
    %v1197 = vadd.f32 %v396, %v1123
    %v1198 = vxor.u32 %v1197, 2147483648
    %v1199 = vmul.f32 %v1198, 1.442695
    %v1200 = vpow.pop %v1199
    %v1201 = vadd.f32 %v1200, 1.0
    %v1202 = vrcp.pop %v1201
    %v1203 = vmul.f32 1.0, %v1202
    %v1204 = vadd.f32 %v397, %v1125
    %v1205 = vxor.u32 %v1204, 2147483648
    %v1206 = vmul.f32 %v1205, 1.442695
    %v1207 = vpow.pop %v1206
    %v1208 = vadd.f32 %v1207, 1.0
    %v1209 = vrcp.pop %v1208
    %v1210 = vmul.f32 1.0, %v1209
    %v1211 = vmul.f32 %v1203, %v1194
    %v1212 = vadd.f32 %v398, %v1211
    %v1213 = vtanh.pop %v1212
    %v1214 = vsub.f32 1.0, %v1210
    %v1215 = vmul.f32 %v1214, %v1213
    %v1216 = vmul.f32 %v1210, %v1055
    %v1217 = vadd.f32 %v1215, %v1216
    %1218 = vmatprep.subr.mxu0 %v37
    %1219 = vmatpush1.msra.mxu0 %v36
    %1220 = vmatprep.subr.mxu0 %v40
    %1221 = vmatpush1.msra.mxu0 %v39
    %1222 = vmatprep.subr.mxu0 %v43
    %1223 = vmatpush1.msra.mxu0 %v42
    %1224 = vmatprep.subr.mxu0 %v46
    %1225 = vmatpush1.msra.mxu0 %v45
    %1226 = vmatprep.subr.mxu0 %v49
    %1227 = vmatpush1.msra.mxu0 %v48
    %1228 = vmatprep.subr.mxu0 %v52
    %1229 = vmatpush1.msra.mxu0 %v51
    %1230 = vmatprep.subr.mxu0 %v55
    %1231 = vmatpush1.msra.mxu0 %v54
    %1232 = vmatprep.subr.mxu0 %v58
    %1233 = vmatpush1.msra.mxu0 %v57
    %1234 = vmatprep.subr.mxu0 %v61
    %1235 = vmatpush1.msra.mxu0 %v60
    %1236 = vmatprep.subr.mxu0 %v64
    %1237 = vmatpush1.msra.mxu0 %v63
    %1238 = vmatprep.subr.mxu0 %v67
    %1239 = vmatpush1.msra.mxu0 %v66
    %1240 = vmatprep.subr.mxu0 %v70
    %1241 = vmatpush1.msra.mxu0 %v69
    %1242 = vmatprep.subr.mxu0 %v73
    %1243 = vmatpush1.msra.mxu0 %v72
    %1244 = vmatprep.subr.mxu0 %v76
    %1245 = vmatpush1.msra.mxu0 %v75
    %1246 = vmatprep.subr.mxu0 %v79
    %1247 = vmatpush1.msra.mxu0 %v78
    %1248 = vmatprep.subr.mxu0 %v82
    %1249 = vmatpush1.msra.mxu0 %v81
    %1250 = vmatprep.subr.mxu0 0.0
    %1251 = vmatpush1.msra.mxu0 0.0
    %1252 = vmatprep.subr.mxu0 0.0
    %1253 = vmatpush1.msra.mxu0 0.0
    %1254 = vmatprep.subr.mxu0 0.0
    %1255 = vmatpush1.msra.mxu0 0.0
    %1256 = vmatprep.subr.mxu0 0.0
    %1257 = vmatpush1.msra.mxu0 0.0
    %1258 = vmatprep.subr.mxu0 0.0
    %1259 = vmatpush1.msra.mxu0 0.0
    %1260 = vmatprep.subr.mxu0 0.0
    %1261 = vmatpush1.msra.mxu0 0.0
    %1262 = vmatprep.subr.mxu0 0.0
    %1263 = vmatpush1.msra.mxu0 0.0
    %1264 = vmatprep.subr.mxu0 0.0
    %1265 = vmatpush1.msra.mxu0 0.0
    %1266 = vmatprep.subr.mxu0 0.0
    %1267 = vmatpush1.msra.mxu0 0.0
    %1268 = vmatprep.subr.mxu0 0.0
    %1269 = vmatpush1.msra.mxu0 0.0
    %1270 = vmatprep.subr.mxu0 0.0
    %1271 = vmatpush1.msra.mxu0 0.0
    %1272 = vmatprep.subr.mxu0 0.0
    %1273 = vmatpush1.msra.mxu0 0.0
    %1274 = vmatprep.subr.mxu0 0.0
    %1275 = vmatpush1.msra.mxu0 0.0
    %1276 = vmatprep.subr.mxu0 0.0
    %1277 = vmatpush1.msra.mxu0 0.0
    %1278 = vmatprep.subr.mxu0 0.0
    %1279 = vmatpush1.msra.mxu0 0.0
    %1280 = vmatprep.subr.mxu0 0.0
    %1281 = vmatpush1.msra.mxu0 0.0
    %1282 = vmatprep.mubr.f32.mxu0 0.0
    %1283 = vmatmul.mubr.f32.gmra.mrb[0].mxu0 %v1217
    %v1284 = vpop.f32.mrb[0].mxu0
    %v1285 = vadd.f32 %v87, %v1284
    %v1286 = vpop.f32.mrb[0].mxu0
    %v1287 = vadd.f32 %v88, %v1286
    %1288 = vdwg.mxu0
    %1289 = vmatprep.subr.mxu0 0.0
    %1290 = vmatpush1.msra.mxu0 %v38
    %1291 = vmatprep.subr.mxu0 0.0
    %1292 = vmatpush1.msra.mxu0 %v41
    %1293 = vmatprep.subr.mxu0 0.0
    %1294 = vmatpush1.msra.mxu0 %v44
    %1295 = vmatprep.subr.mxu0 0.0
    %1296 = vmatpush1.msra.mxu0 %v47
    %1297 = vmatprep.subr.mxu0 0.0
    %1298 = vmatpush1.msra.mxu0 %v50
    %1299 = vmatprep.subr.mxu0 0.0
    %1300 = vmatpush1.msra.mxu0 %v53
    %1301 = vmatprep.subr.mxu0 0.0
    %1302 = vmatpush1.msra.mxu0 %v56
    %1303 = vmatprep.subr.mxu0 0.0
    %1304 = vmatpush1.msra.mxu0 %v59
    %1305 = vmatprep.subr.mxu0 0.0
    %1306 = vmatpush1.msra.mxu0 %v62
    %1307 = vmatprep.subr.mxu0 0.0
    %1308 = vmatpush1.msra.mxu0 %v65
    %1309 = vmatprep.subr.mxu0 0.0
    %1310 = vmatpush1.msra.mxu0 %v68
    %1311 = vmatprep.subr.mxu0 0.0
    %1312 = vmatpush1.msra.mxu0 %v71
    %1313 = vmatprep.subr.mxu0 0.0
    %1314 = vmatpush1.msra.mxu0 %v74
    %1315 = vmatprep.subr.mxu0 0.0
    %1316 = vmatpush1.msra.mxu0 %v77
    %1317 = vmatprep.subr.mxu0 0.0
    %1318 = vmatpush1.msra.mxu0 %v80
    %1319 = vmatprep.subr.mxu0 0.0
    %1320 = vmatpush1.msra.mxu0 %v83
    %1321 = vmatprep.subr.mxu0 0.0
    %1322 = vmatpush1.msra.mxu0 0.0
    %1323 = vmatprep.subr.mxu0 0.0
    %1324 = vmatpush1.msra.mxu0 0.0
    %1325 = vmatprep.subr.mxu0 0.0
    %1326 = vmatpush1.msra.mxu0 0.0
    %1327 = vmatprep.subr.mxu0 0.0
    %1328 = vmatpush1.msra.mxu0 0.0
    %1329 = vmatprep.subr.mxu0 0.0
    %1330 = vmatpush1.msra.mxu0 0.0
    %1331 = vmatprep.subr.mxu0 0.0
    %1332 = vmatpush1.msra.mxu0 0.0
    %1333 = vmatprep.subr.mxu0 0.0
    %1334 = vmatpush1.msra.mxu0 0.0
    %1335 = vmatprep.subr.mxu0 0.0
    %1336 = vmatpush1.msra.mxu0 0.0
    %1337 = vmatprep.subr.mxu0 0.0
    %1338 = vmatpush1.msra.mxu0 0.0
    %1339 = vmatprep.subr.mxu0 0.0
    %1340 = vmatpush1.msra.mxu0 0.0
    %1341 = vmatprep.subr.mxu0 0.0
    %1342 = vmatpush1.msra.mxu0 0.0
    %1343 = vmatprep.subr.mxu0 0.0
    %1344 = vmatpush1.msra.mxu0 0.0
    %1345 = vmatprep.subr.mxu0 0.0
    %1346 = vmatpush1.msra.mxu0 0.0
    %1347 = vmatprep.subr.mxu0 0.0
    %1348 = vmatpush1.msra.mxu0 0.0
    %1349 = vmatprep.subr.mxu0 0.0
    %1350 = vmatpush1.msra.mxu0 0.0
    %1351 = vmatprep.subr.mxu0 0.0
    %1352 = vmatpush1.msra.mxu0 0.0
    %1353 = vmatprep.mubr.f32.mxu0 0.0
    %1354 = vmatmul.mubr.f32.gmra.mrb[0].mxu0 %v1217
    %v1355 = vpop.f32.mrb[0].mxu0
    %v1356 = vadd.f32 %v89, %v1355
    %v1357 = vpop.f32.mrb[0].mxu0
    %1358 = vdwg.mxu0
    %v1359 = vadd.f32 %v399, %v1285
    %v1360 = vxor.u32 %v1359, 2147483648
    %v1361 = vmul.f32 %v1360, 1.442695
    %v1362 = vpow.pop %v1361
    %v1363 = vadd.f32 %v1362, 1.0
    %v1364 = vrcp.pop %v1363
    %v1365 = vmul.f32 1.0, %v1364
    %v1366 = vadd.f32 %v400, %v1287
    %v1367 = vxor.u32 %v1366, 2147483648
    %v1368 = vmul.f32 %v1367, 1.442695
    %v1369 = vpow.pop %v1368
    %v1370 = vadd.f32 %v1369, 1.0
    %v1371 = vrcp.pop %v1370
    %v1372 = vmul.f32 1.0, %v1371
    %v1373 = vmul.f32 %v1365, %v1356
    %v1374 = vadd.f32 %v401, %v1373
    %v1375 = vtanh.pop %v1374
    %v1376 = vsub.f32 1.0, %v1372
    %v1377 = vmul.f32 %v1376, %v1375
    %v1378 = vmul.f32 %v1372, %v1217
    %v1379 = vadd.f32 %v1377, %v1378
    %1380 = vmatprep.subr.mxu0 %v37
    %1381 = vmatpush1.msra.mxu0 %v36
    %1382 = vmatprep.subr.mxu0 %v40
    %1383 = vmatpush1.msra.mxu0 %v39
    %1384 = vmatprep.subr.mxu0 %v43
    %1385 = vmatpush1.msra.mxu0 %v42
    %1386 = vmatprep.subr.mxu0 %v46
    %1387 = vmatpush1.msra.mxu0 %v45
    %1388 = vmatprep.subr.mxu0 %v49
    %1389 = vmatpush1.msra.mxu0 %v48
    %1390 = vmatprep.subr.mxu0 %v52
    %1391 = vmatpush1.msra.mxu0 %v51
    %1392 = vmatprep.subr.mxu0 %v55
    %1393 = vmatpush1.msra.mxu0 %v54
    %1394 = vmatprep.subr.mxu0 %v58
    %1395 = vmatpush1.msra.mxu0 %v57
    %1396 = vmatprep.subr.mxu0 %v61
    %1397 = vmatpush1.msra.mxu0 %v60
    %1398 = vmatprep.subr.mxu0 %v64
    %1399 = vmatpush1.msra.mxu0 %v63
    %1400 = vmatprep.subr.mxu0 %v67
    %1401 = vmatpush1.msra.mxu0 %v66
    %1402 = vmatprep.subr.mxu0 %v70
    %1403 = vmatpush1.msra.mxu0 %v69
    %1404 = vmatprep.subr.mxu0 %v73
    %1405 = vmatpush1.msra.mxu0 %v72
    %1406 = vmatprep.subr.mxu0 %v76
    %1407 = vmatpush1.msra.mxu0 %v75
    %1408 = vmatprep.subr.mxu0 %v79
    %1409 = vmatpush1.msra.mxu0 %v78
    %1410 = vmatprep.subr.mxu0 %v82
    %1411 = vmatpush1.msra.mxu0 %v81
    %1412 = vmatprep.subr.mxu0 0.0
    %1413 = vmatpush1.msra.mxu0 0.0
    %1414 = vmatprep.subr.mxu0 0.0
    %1415 = vmatpush1.msra.mxu0 0.0
    %1416 = vmatprep.subr.mxu0 0.0
    %1417 = vmatpush1.msra.mxu0 0.0
    %1418 = vmatprep.subr.mxu0 0.0
    %1419 = vmatpush1.msra.mxu0 0.0
    %1420 = vmatprep.subr.mxu0 0.0
    %1421 = vmatpush1.msra.mxu0 0.0
    %1422 = vmatprep.subr.mxu0 0.0
    %1423 = vmatpush1.msra.mxu0 0.0
    %1424 = vmatprep.subr.mxu0 0.0
    %1425 = vmatpush1.msra.mxu0 0.0
    %1426 = vmatprep.subr.mxu0 0.0
    %1427 = vmatpush1.msra.mxu0 0.0
    %1428 = vmatprep.subr.mxu0 0.0
    %1429 = vmatpush1.msra.mxu0 0.0
    %1430 = vmatprep.subr.mxu0 0.0
    %1431 = vmatpush1.msra.mxu0 0.0
    %1432 = vmatprep.subr.mxu0 0.0
    %1433 = vmatpush1.msra.mxu0 0.0
    %1434 = vmatprep.subr.mxu0 0.0
    %1435 = vmatpush1.msra.mxu0 0.0
    %1436 = vmatprep.subr.mxu0 0.0
    %1437 = vmatpush1.msra.mxu0 0.0
    %1438 = vmatprep.subr.mxu0 0.0
    %1439 = vmatpush1.msra.mxu0 0.0
    %1440 = vmatprep.subr.mxu0 0.0
    %1441 = vmatpush1.msra.mxu0 0.0
    %1442 = vmatprep.subr.mxu0 0.0
    %1443 = vmatpush1.msra.mxu0 0.0
    %1444 = vmatprep.mubr.f32.mxu0 0.0
    %1445 = vmatmul.mubr.f32.gmra.mrb[0].mxu0 %v1379
    %v1446 = vpop.f32.mrb[0].mxu0
    %v1447 = vadd.f32 %v87, %v1446
    %v1448 = vpop.f32.mrb[0].mxu0
    %v1449 = vadd.f32 %v88, %v1448
    %1450 = vdwg.mxu0
    %1451 = vmatprep.subr.mxu0 0.0
    %1452 = vmatpush1.msra.mxu0 %v38
    %1453 = vmatprep.subr.mxu0 0.0
    %1454 = vmatpush1.msra.mxu0 %v41
    %1455 = vmatprep.subr.mxu0 0.0
    %1456 = vmatpush1.msra.mxu0 %v44
    %1457 = vmatprep.subr.mxu0 0.0
    %1458 = vmatpush1.msra.mxu0 %v47
    %1459 = vmatprep.subr.mxu0 0.0
    %1460 = vmatpush1.msra.mxu0 %v50
    %1461 = vmatprep.subr.mxu0 0.0
    %1462 = vmatpush1.msra.mxu0 %v53
    %1463 = vmatprep.subr.mxu0 0.0
    %1464 = vmatpush1.msra.mxu0 %v56
    %1465 = vmatprep.subr.mxu0 0.0
    %1466 = vmatpush1.msra.mxu0 %v59
    %1467 = vmatprep.subr.mxu0 0.0
    %1468 = vmatpush1.msra.mxu0 %v62
    %1469 = vmatprep.subr.mxu0 0.0
    %1470 = vmatpush1.msra.mxu0 %v65
    %1471 = vmatprep.subr.mxu0 0.0
    %1472 = vmatpush1.msra.mxu0 %v68
    %1473 = vmatprep.subr.mxu0 0.0
    %1474 = vmatpush1.msra.mxu0 %v71
    %1475 = vmatprep.subr.mxu0 0.0
    %1476 = vmatpush1.msra.mxu0 %v74
    %1477 = vmatprep.subr.mxu0 0.0
    %1478 = vmatpush1.msra.mxu0 %v77
    %1479 = vmatprep.subr.mxu0 0.0
    %1480 = vmatpush1.msra.mxu0 %v80
    %1481 = vmatprep.subr.mxu0 0.0
    %1482 = vmatpush1.msra.mxu0 %v83
    %1483 = vmatprep.subr.mxu0 0.0
    %1484 = vmatpush1.msra.mxu0 0.0
    %1485 = vmatprep.subr.mxu0 0.0
    %1486 = vmatpush1.msra.mxu0 0.0
    %1487 = vmatprep.subr.mxu0 0.0
    %1488 = vmatpush1.msra.mxu0 0.0
    %1489 = vmatprep.subr.mxu0 0.0
    %1490 = vmatpush1.msra.mxu0 0.0
    %1491 = vmatprep.subr.mxu0 0.0
    %1492 = vmatpush1.msra.mxu0 0.0
    %1493 = vmatprep.subr.mxu0 0.0
    %1494 = vmatpush1.msra.mxu0 0.0
    %1495 = vmatprep.subr.mxu0 0.0
    %1496 = vmatpush1.msra.mxu0 0.0
    %1497 = vmatprep.subr.mxu0 0.0
    %1498 = vmatpush1.msra.mxu0 0.0
    %1499 = vmatprep.subr.mxu0 0.0
    %1500 = vmatpush1.msra.mxu0 0.0
    %1501 = vmatprep.subr.mxu0 0.0
    %1502 = vmatpush1.msra.mxu0 0.0
    %1503 = vmatprep.subr.mxu0 0.0
    %1504 = vmatpush1.msra.mxu0 0.0
    %1505 = vmatprep.subr.mxu0 0.0
    %1506 = vmatpush1.msra.mxu0 0.0
    %1507 = vmatprep.subr.mxu0 0.0
    %1508 = vmatpush1.msra.mxu0 0.0
    %1509 = vmatprep.subr.mxu0 0.0
    %1510 = vmatpush1.msra.mxu0 0.0
    %1511 = vmatprep.subr.mxu0 0.0
    %1512 = vmatpush1.msra.mxu0 0.0
    %1513 = vmatprep.subr.mxu0 0.0
    %1514 = vmatpush1.msra.mxu0 0.0
    %1515 = vmatprep.mubr.f32.mxu0 0.0
    %1516 = vmatmul.mubr.f32.gmra.mrb[0].mxu0 %v1379
    %v1517 = vpop.f32.mrb[0].mxu0
    %v1518 = vadd.f32 %v89, %v1517
    %v1519 = vpop.f32.mrb[0].mxu0
    %1520 = vdwg.mxu0
    %v1521 = vadd.f32 %v402, %v1447
    %v1522 = vxor.u32 %v1521, 2147483648
    %v1523 = vmul.f32 %v1522, 1.442695
    %v1524 = vpow.pop %v1523
    %v1525 = vadd.f32 %v1524, 1.0
    %v1526 = vrcp.pop %v1525
    %v1527 = vmul.f32 1.0, %v1526
    %v1528 = vadd.f32 %v403, %v1449
    %v1529 = vxor.u32 %v1528, 2147483648
    %v1530 = vmul.f32 %v1529, 1.442695
    %v1531 = vpow.pop %v1530
    %v1532 = vadd.f32 %v1531, 1.0
    %v1533 = vrcp.pop %v1532
    %v1534 = vmul.f32 1.0, %v1533
    %v1535 = vmul.f32 %v1527, %v1518
    %v1536 = vadd.f32 %v404, %v1535
    %v1537 = vtanh.pop %v1536
    %v1538 = vsub.f32 1.0, %v1534
    %v1539 = vmul.f32 %v1538, %v1537
    %v1540 = vmul.f32 %v1534, %v1379
    %v1541 = vadd.f32 %v1539, %v1540
    %1542 = vmatprep.subr.mxu0 %v37
    %1543 = vmatpush1.msra.mxu0 %v36
    %1544 = vmatprep.subr.mxu0 %v40
    %1545 = vmatpush1.msra.mxu0 %v39
    %1546 = vmatprep.subr.mxu0 %v43
    %1547 = vmatpush1.msra.mxu0 %v42
    %1548 = vmatprep.subr.mxu0 %v46
    %1549 = vmatpush1.msra.mxu0 %v45
    %1550 = vmatprep.subr.mxu0 %v49
    %1551 = vmatpush1.msra.mxu0 %v48
    %1552 = vmatprep.subr.mxu0 %v52
    %1553 = vmatpush1.msra.mxu0 %v51
    %1554 = vmatprep.subr.mxu0 %v55
    %1555 = vmatpush1.msra.mxu0 %v54
    %1556 = vmatprep.subr.mxu0 %v58
    %1557 = vmatpush1.msra.mxu0 %v57
    %1558 = vmatprep.subr.mxu0 %v61
    %1559 = vmatpush1.msra.mxu0 %v60
    %1560 = vmatprep.subr.mxu0 %v64
    %1561 = vmatpush1.msra.mxu0 %v63
    %1562 = vmatprep.subr.mxu0 %v67
    %1563 = vmatpush1.msra.mxu0 %v66
    %1564 = vmatprep.subr.mxu0 %v70
    %1565 = vmatpush1.msra.mxu0 %v69
    %1566 = vmatprep.subr.mxu0 %v73
    %1567 = vmatpush1.msra.mxu0 %v72
    %1568 = vmatprep.subr.mxu0 %v76
    %1569 = vmatpush1.msra.mxu0 %v75
    %1570 = vmatprep.subr.mxu0 %v79
    %1571 = vmatpush1.msra.mxu0 %v78
    %1572 = vmatprep.subr.mxu0 %v82
    %1573 = vmatpush1.msra.mxu0 %v81
    %1574 = vmatprep.subr.mxu0 0.0
    %1575 = vmatpush1.msra.mxu0 0.0
    %1576 = vmatprep.subr.mxu0 0.0
    %1577 = vmatpush1.msra.mxu0 0.0
    %1578 = vmatprep.subr.mxu0 0.0
    %1579 = vmatpush1.msra.mxu0 0.0
    %1580 = vmatprep.subr.mxu0 0.0
    %1581 = vmatpush1.msra.mxu0 0.0
    %1582 = vmatprep.subr.mxu0 0.0
    %1583 = vmatpush1.msra.mxu0 0.0
    %1584 = vmatprep.subr.mxu0 0.0
    %1585 = vmatpush1.msra.mxu0 0.0
    %1586 = vmatprep.subr.mxu0 0.0
    %1587 = vmatpush1.msra.mxu0 0.0
    %1588 = vmatprep.subr.mxu0 0.0
    %1589 = vmatpush1.msra.mxu0 0.0
    %1590 = vmatprep.subr.mxu0 0.0
    %1591 = vmatpush1.msra.mxu0 0.0
    %1592 = vmatprep.subr.mxu0 0.0
    %1593 = vmatpush1.msra.mxu0 0.0
    %1594 = vmatprep.subr.mxu0 0.0
    %1595 = vmatpush1.msra.mxu0 0.0
    %1596 = vmatprep.subr.mxu0 0.0
    %1597 = vmatpush1.msra.mxu0 0.0
    %1598 = vmatprep.subr.mxu0 0.0
    %1599 = vmatpush1.msra.mxu0 0.0
    %1600 = vmatprep.subr.mxu0 0.0
    %1601 = vmatpush1.msra.mxu0 0.0
    %1602 = vmatprep.subr.mxu0 0.0
    %1603 = vmatpush1.msra.mxu0 0.0
    %1604 = vmatprep.subr.mxu0 0.0
    %1605 = vmatpush1.msra.mxu0 0.0
    %1606 = vmatprep.mubr.f32.mxu0 0.0
    %1607 = vmatmul.mubr.f32.gmra.mrb[0].mxu0 %v1541
    %v1608 = vpop.f32.mrb[0].mxu0
    %v1609 = vadd.f32 %v87, %v1608
    %v1610 = vpop.f32.mrb[0].mxu0
    %v1611 = vadd.f32 %v88, %v1610
    %1612 = vdwg.mxu0
    %1613 = vmatprep.subr.mxu0 0.0
    %1614 = vmatpush1.msra.mxu0 %v38
    %1615 = vmatprep.subr.mxu0 0.0
    %1616 = vmatpush1.msra.mxu0 %v41
    %1617 = vmatprep.subr.mxu0 0.0
    %1618 = vmatpush1.msra.mxu0 %v44
    %1619 = vmatprep.subr.mxu0 0.0
    %1620 = vmatpush1.msra.mxu0 %v47
    %1621 = vmatprep.subr.mxu0 0.0
    %1622 = vmatpush1.msra.mxu0 %v50
    %1623 = vmatprep.subr.mxu0 0.0
    %1624 = vmatpush1.msra.mxu0 %v53
    %1625 = vmatprep.subr.mxu0 0.0
    %1626 = vmatpush1.msra.mxu0 %v56
    %1627 = vmatprep.subr.mxu0 0.0
    %1628 = vmatpush1.msra.mxu0 %v59
    %1629 = vmatprep.subr.mxu0 0.0
    %1630 = vmatpush1.msra.mxu0 %v62
    %1631 = vmatprep.subr.mxu0 0.0
    %1632 = vmatpush1.msra.mxu0 %v65
    %1633 = vmatprep.subr.mxu0 0.0
    %1634 = vmatpush1.msra.mxu0 %v68
    %1635 = vmatprep.subr.mxu0 0.0
    %1636 = vmatpush1.msra.mxu0 %v71
    %1637 = vmatprep.subr.mxu0 0.0
    %1638 = vmatpush1.msra.mxu0 %v74
    %1639 = vmatprep.subr.mxu0 0.0
    %1640 = vmatpush1.msra.mxu0 %v77
    %1641 = vmatprep.subr.mxu0 0.0
    %1642 = vmatpush1.msra.mxu0 %v80
    %1643 = vmatprep.subr.mxu0 0.0
    %1644 = vmatpush1.msra.mxu0 %v83
    %1645 = vmatprep.subr.mxu0 0.0
    %1646 = vmatpush1.msra.mxu0 0.0
    %1647 = vmatprep.subr.mxu0 0.0
    %1648 = vmatpush1.msra.mxu0 0.0
    %1649 = vmatprep.subr.mxu0 0.0
    %1650 = vmatpush1.msra.mxu0 0.0
    %1651 = vmatprep.subr.mxu0 0.0
    %1652 = vmatpush1.msra.mxu0 0.0
    %1653 = vmatprep.subr.mxu0 0.0
    %1654 = vmatpush1.msra.mxu0 0.0
    %1655 = vmatprep.subr.mxu0 0.0
    %1656 = vmatpush1.msra.mxu0 0.0
    %1657 = vmatprep.subr.mxu0 0.0
    %1658 = vmatpush1.msra.mxu0 0.0
    %1659 = vmatprep.subr.mxu0 0.0
    %1660 = vmatpush1.msra.mxu0 0.0
    %1661 = vmatprep.subr.mxu0 0.0
    %1662 = vmatpush1.msra.mxu0 0.0
    %1663 = vmatprep.subr.mxu0 0.0
    %1664 = vmatpush1.msra.mxu0 0.0
    %1665 = vmatprep.subr.mxu0 0.0
    %1666 = vmatpush1.msra.mxu0 0.0
    %1667 = vmatprep.subr.mxu0 0.0
    %1668 = vmatpush1.msra.mxu0 0.0
    %1669 = vmatprep.subr.mxu0 0.0
    %1670 = vmatpush1.msra.mxu0 0.0
    %1671 = vmatprep.subr.mxu0 0.0
    %1672 = vmatpush1.msra.mxu0 0.0
    %1673 = vmatprep.subr.mxu0 0.0
    %1674 = vmatpush1.msra.mxu0 0.0
    %1675 = vmatprep.subr.mxu0 0.0
    %1676 = vmatpush1.msra.mxu0 0.0
    %1677 = vmatprep.mubr.f32.mxu0 0.0
    %1678 = vmatmul.mubr.f32.gmra.mrb[0].mxu0 %v1541
    %v1679 = vpop.f32.mrb[0].mxu0
    %v1680 = vadd.f32 %v89, %v1679
    %v1681 = vpop.f32.mrb[0].mxu0
    %1682 = vdwg.mxu0
    %v1683 = vadd.f32 %v405, %v1609
    %v1684 = vxor.u32 %v1683, 2147483648
    %v1685 = vmul.f32 %v1684, 1.442695
    %v1686 = vpow.pop %v1685
    %v1687 = vadd.f32 %v1686, 1.0
    %v1688 = vrcp.pop %v1687
    %v1689 = vmul.f32 1.0, %v1688
    %v1690 = vadd.f32 %v406, %v1611
    %v1691 = vxor.u32 %v1690, 2147483648
    %v1692 = vmul.f32 %v1691, 1.442695
    %v1693 = vpow.pop %v1692
    %v1694 = vadd.f32 %v1693, 1.0
    %v1695 = vrcp.pop %v1694
    %v1696 = vmul.f32 1.0, %v1695
    %v1697 = vmul.f32 %v1689, %v1680
    %v1698 = vadd.f32 %v407, %v1697
    %v1699 = vtanh.pop %v1698
    %v1700 = vsub.f32 1.0, %v1696
    %v1701 = vmul.f32 %v1700, %v1699
    %v1702 = vmul.f32 %v1696, %v1541
    %v1703 = vadd.f32 %v1701, %v1702
    %1704 = vmatprep.subr.mxu0 %v94
    %1705 = vmatpush1.msra.mxu0 %v93
    %1706 = vmatprep.subr.mxu0 %v97
    %1707 = vmatpush1.msra.mxu0 %v96
    %1708 = vmatprep.subr.mxu0 %v100
    %1709 = vmatpush1.msra.mxu0 %v99
    %1710 = vmatprep.subr.mxu0 %v103
    %1711 = vmatpush1.msra.mxu0 %v102
    %1712 = vmatprep.subr.mxu0 %v106
    %1713 = vmatpush1.msra.mxu0 %v105
    %1714 = vmatprep.subr.mxu0 %v109
    %1715 = vmatpush1.msra.mxu0 %v108
    %1716 = vmatprep.subr.mxu0 %v112
    %1717 = vmatpush1.msra.mxu0 %v111
    %1718 = vmatprep.subr.mxu0 %v115
    %1719 = vmatpush1.msra.mxu0 %v114
    %1720 = vmatprep.subr.mxu0 %v118
    %1721 = vmatpush1.msra.mxu0 %v117
    %1722 = vmatprep.subr.mxu0 %v121
    %1723 = vmatpush1.msra.mxu0 %v120
    %1724 = vmatprep.subr.mxu0 %v124
    %1725 = vmatpush1.msra.mxu0 %v123
    %1726 = vmatprep.subr.mxu0 %v127
    %1727 = vmatpush1.msra.mxu0 %v126
    %1728 = vmatprep.subr.mxu0 %v130
    %1729 = vmatpush1.msra.mxu0 %v129
    %1730 = vmatprep.subr.mxu0 %v133
    %1731 = vmatpush1.msra.mxu0 %v132
    %1732 = vmatprep.subr.mxu0 %v136
    %1733 = vmatpush1.msra.mxu0 %v135
    %1734 = vmatprep.subr.mxu0 %v139
    %1735 = vmatpush1.msra.mxu0 %v138
    %1736 = vmatprep.subr.mxu0 0.0
    %1737 = vmatpush1.msra.mxu0 0.0
    %1738 = vmatprep.subr.mxu0 0.0
    %1739 = vmatpush1.msra.mxu0 0.0
    %1740 = vmatprep.subr.mxu0 0.0
    %1741 = vmatpush1.msra.mxu0 0.0
    %1742 = vmatprep.subr.mxu0 0.0
    %1743 = vmatpush1.msra.mxu0 0.0
    %1744 = vmatprep.subr.mxu0 0.0
    %1745 = vmatpush1.msra.mxu0 0.0
    %1746 = vmatprep.subr.mxu0 0.0
    %1747 = vmatpush1.msra.mxu0 0.0
    %1748 = vmatprep.subr.mxu0 0.0
    %1749 = vmatpush1.msra.mxu0 0.0
    %1750 = vmatprep.subr.mxu0 0.0
    %1751 = vmatpush1.msra.mxu0 0.0
    %1752 = vmatprep.subr.mxu0 0.0
    %1753 = vmatpush1.msra.mxu0 0.0
    %1754 = vmatprep.subr.mxu0 0.0
    %1755 = vmatpush1.msra.mxu0 0.0
    %1756 = vmatprep.subr.mxu0 0.0
    %1757 = vmatpush1.msra.mxu0 0.0
    %1758 = vmatprep.subr.mxu0 0.0
    %1759 = vmatpush1.msra.mxu0 0.0
    %1760 = vmatprep.subr.mxu0 0.0
    %1761 = vmatpush1.msra.mxu0 0.0
    %1762 = vmatprep.subr.mxu0 0.0
    %1763 = vmatpush1.msra.mxu0 0.0
    %1764 = vmatprep.subr.mxu0 0.0
    %1765 = vmatpush1.msra.mxu0 0.0
    %1766 = vmatprep.subr.mxu0 0.0
    %1767 = vmatpush1.msra.mxu0 0.0
    %1768 = vmatprep.mubr.f32.mxu0 0.0
    %1769 = vmatmul.mubr.f32.gmra.mrb[0].mxu0 %v1703
    %v1770 = vpop.f32.mrb[0].mxu0
    %v1771 = vadd.f32 %v90, %v1770
    %v1772 = vpop.f32.mrb[0].mxu0
    %v1773 = vadd.f32 %v91, %v1772
    %1774 = vdwg.mxu0
    %1775 = vmatprep.subr.mxu0 0.0
    %1776 = vmatpush1.msra.mxu0 %v95
    %1777 = vmatprep.subr.mxu0 0.0
    %1778 = vmatpush1.msra.mxu0 %v98
    %1779 = vmatprep.subr.mxu0 0.0
    %1780 = vmatpush1.msra.mxu0 %v101
    %1781 = vmatprep.subr.mxu0 0.0
    %1782 = vmatpush1.msra.mxu0 %v104
    %1783 = vmatprep.subr.mxu0 0.0
    %1784 = vmatpush1.msra.mxu0 %v107
    %1785 = vmatprep.subr.mxu0 0.0
    %1786 = vmatpush1.msra.mxu0 %v110
    %1787 = vmatprep.subr.mxu0 0.0
    %1788 = vmatpush1.msra.mxu0 %v113
    %1789 = vmatprep.subr.mxu0 0.0
    %1790 = vmatpush1.msra.mxu0 %v116
    %1791 = vmatprep.subr.mxu0 0.0
    %1792 = vmatpush1.msra.mxu0 %v119
    %1793 = vmatprep.subr.mxu0 0.0
    %1794 = vmatpush1.msra.mxu0 %v122
    %1795 = vmatprep.subr.mxu0 0.0
    %1796 = vmatpush1.msra.mxu0 %v125
    %1797 = vmatprep.subr.mxu0 0.0
    %1798 = vmatpush1.msra.mxu0 %v128
    %1799 = vmatprep.subr.mxu0 0.0
    %1800 = vmatpush1.msra.mxu0 %v131
    %1801 = vmatprep.subr.mxu0 0.0
    %1802 = vmatpush1.msra.mxu0 %v134
    %1803 = vmatprep.subr.mxu0 0.0
    %1804 = vmatpush1.msra.mxu0 %v137
    %1805 = vmatprep.subr.mxu0 0.0
    %1806 = vmatpush1.msra.mxu0 %v140
    %1807 = vmatprep.subr.mxu0 0.0
    %1808 = vmatpush1.msra.mxu0 0.0
    %1809 = vmatprep.subr.mxu0 0.0
    %1810 = vmatpush1.msra.mxu0 0.0
    %1811 = vmatprep.subr.mxu0 0.0
    %1812 = vmatpush1.msra.mxu0 0.0
    %1813 = vmatprep.subr.mxu0 0.0
    %1814 = vmatpush1.msra.mxu0 0.0
    %1815 = vmatprep.subr.mxu0 0.0
    %1816 = vmatpush1.msra.mxu0 0.0
    %1817 = vmatprep.subr.mxu0 0.0
    %1818 = vmatpush1.msra.mxu0 0.0
    %1819 = vmatprep.subr.mxu0 0.0
    %1820 = vmatpush1.msra.mxu0 0.0
    %1821 = vmatprep.subr.mxu0 0.0
    %1822 = vmatpush1.msra.mxu0 0.0
    %1823 = vmatprep.subr.mxu0 0.0
    %1824 = vmatpush1.msra.mxu0 0.0
    %1825 = vmatprep.subr.mxu0 0.0
    %1826 = vmatpush1.msra.mxu0 0.0
    %1827 = vmatprep.subr.mxu0 0.0
    %1828 = vmatpush1.msra.mxu0 0.0
    %1829 = vmatprep.subr.mxu0 0.0
    %1830 = vmatpush1.msra.mxu0 0.0
    %1831 = vmatprep.subr.mxu0 0.0
    %1832 = vmatpush1.msra.mxu0 0.0
    %1833 = vmatprep.subr.mxu0 0.0
    %1834 = vmatpush1.msra.mxu0 0.0
    %1835 = vmatprep.subr.mxu0 0.0
    %1836 = vmatpush1.msra.mxu0 0.0
    %1837 = vmatprep.subr.mxu0 0.0
    %1838 = vmatpush1.msra.mxu0 0.0
    %1839 = vmatprep.mubr.f32.mxu0 0.0
    %1840 = vmatmul.mubr.f32.gmra.mrb[0].mxu0 %v1703
    %v1841 = vpop.f32.mrb[0].mxu0
    %v1842 = vadd.f32 %v92, %v1841
    %v1843 = vpop.f32.mrb[0].mxu0
    %1844 = vdwg.mxu0
    %1845 = vst [vmem:[%s2] sm:$0xff] %v1771
    %1846 = vst [vmem:[%s2 + $0x8] sm:$0xff] %v1773
    %1847 = vst [vmem:[%s2 + $0x10] sm:$0xff] %v1842
    // Predicated region
    $region14: #{gru_fc_forward.1} parent=1 // pred_check
      _
    $region15: #{gru_fc_forward.1} parent=1 // pred_check_branch
      %1849 = sbr.rel (0) target = $region17
    $region16: #{gru_fc_forward.1} parent=1 // pred_region
      _
    $region17: #{gru_fc_forward.1} parent=1 // pred_fallthru
      _
    // Predicated region
    $region18: #{gru_fc_forward.1} parent=1 // pred_check
      _
    $region19: #{gru_fc_forward.1} parent=1 // pred_check_branch
      %1851 = sbr.rel (0) target = $region21
    $region20: #{gru_fc_forward.1} parent=1 // pred_region
      _
    $region21: #{gru_fc_forward.1} parent=1 // pred_fallthru
      _
    %1852 = vsyncpa [#allocation3], 1

</llo_original>
